<compile_context>
chip_gen: v5e
topology: v5e:2x2
jax: 0.10.0
libtpu: 0.0.40
codegen_flags: <defaults>
</compile_context>

<pallas_src>
from functools import partial

import jax
import jax.numpy as jnp
from jax.experimental import pallas as pl
from jax.experimental.pallas import tpu as pltpu


def _round_up(x, m):
    return ((x + m - 1) // m) * m


def _pick_batch_tile(B):
    """Single grid step unless the batch is big enough to amortize a split.

    v5e/v6e have one TensorCore: the grid is a serial loop, so extra steps only
    add ~0.35us/step of pipeline overhead.  On v7x a 2-way ("parallel") split
    only pays off once each core gets several hundred rows, because each core
    DMAs its own copy of the weights into its private VMEM.
    """
    if B <= 1024:
        return _round_up(max(B, 1), 8)
    return 512


def decoder_kernel(z_ref, w1_ref, b1_ref, w2_ref, b2_ref, out_ref):
    # MXU matmuls in the weight dtype (bf16 by default) with f32 accumulation;
    # biases/activations in f32; sigmoid on the EUP; store in the output dtype.
    z = z_ref[...].astype(w1_ref.dtype)
    h = jnp.dot(z, w1_ref[...], preferred_element_type=jnp.float32)
    h = jnp.maximum(h + b1_ref[...], 0.0)                       # Linear -> ReLU
    logits = jnp.dot(h.astype(w2_ref.dtype), w2_ref[...],
                     preferred_element_type=jnp.float32)
    logits = logits + b2_ref[...]
    out_ref[...] = jax.nn.sigmoid(logits).astype(out_ref.dtype)  # Linear -> sigmoid


@partial(jax.jit, static_argnames=("n_dims",))
def one_layer_decoder(z, padded_params, n_dims):
    """Forward pass. `padded_params` must come from prepare_params()."""
    w1p, b1p, w2p, b2p = padded_params
    B, latent = z.shape
    n_pad = w2p.shape[1]

    batch_tile = _pick_batch_tile(B)
    B_pad = _round_up(B, batch_tile)
    if B_pad != B:
        z = jnp.pad(z, ((0, B_pad - B), (0, 0)))

    grid_steps = B_pad // batch_tile

    def const_spec(shape):
        # Grid-invariant operands: constant block index -> fetched once.  With a
        # multi-step grid, single-buffer them so no useless second revolving
        # buffer is allocated; with one grid step this is moot.
        kwargs = {} if grid_steps == 1 else {"pipeline_mode": pl.Buffered(1)}
        return pl.BlockSpec(shape, lambda i: (0, 0), **kwargs)

    out = pl.pallas_call(
        decoder_kernel,
        out_shape=jax.ShapeDtypeStruct((B_pad, n_pad), z.dtype),
        grid_spec=pltpu.PrefetchScalarGridSpec(
            num_scalar_prefetch=0,
            grid=(grid_steps,),
            in_specs=[
                pl.BlockSpec((batch_tile, latent), lambda i: (i, 0)),  # z tile
                const_spec(w1p.shape), const_spec(b1p.shape),
                const_spec(w2p.shape), const_spec(b2p.shape),
            ],
            out_specs=pl.BlockSpec((batch_tile, n_pad), lambda i: (i, 0)),
        ),
        compiler_params=pltpu.CompilerParams(
            dimension_semantics=("parallel",)),
    )(z, w1p, b1p, w2p, b2p)

    # Drop output lane padding (and batch padding if any).
    # TODO(synk): consumers that accept padded/bf16 outputs can skip this slice
    # and emit a bf16 out_shape to halve store traffic; kept here to preserve
    # the module's exact output shape/dtype.
    return out[:B, :n_dims]


def prepare_params(params, weight_dtype=jnp.bfloat16):
    """Pad + cast parameters ONCE, outside the per-call jitted forward.

    * hidden dim padded only to the sublane multiple of `weight_dtype`
      (16 for bf16, 8 for f32) -- never to 128.
    * output feature dim padded to a multiple of 128 (lane-dense stores).
    * weights cast to `weight_dtype` (bf16 default); biases kept in f32.
    Returns (padded_params, n_dims) where n_dims is the unpadded output width.
    """
    w1, b1, w2, b2 = params
    h_dim = w1.shape[1]
    n_dims = w2.shape[1]
    sub = 16 if weight_dtype == jnp.bfloat16 else 8
    h_pad = _round_up(h_dim, sub)
    n_pad = _round_up(n_dims, 128)

    f32 = jnp.float32
    w1p = jnp.pad(w1.astype(f32), ((0, 0), (0, h_pad - h_dim))).astype(weight_dtype)
    b1p = jnp.pad(b1.astype(f32), ((0, 0), (0, h_pad - h_dim)))
    w2p = jnp.pad(w2.astype(f32), ((0, h_pad - h_dim), (0, n_pad - n_dims))).astype(weight_dtype)
    b2p = jnp.pad(b2.astype(f32), ((0, 0), (0, n_pad - n_dims)))
    return (w1p, b1p, w2p, b2p), n_dims


def init_params(key, latent_dims, h_dim, n_dims, dtype=jnp.float32):
    """PyTorch-Linear-style init (uniform +/- 1/sqrt(fan_in)).

    Weights stored as [in, out] (transpose of PyTorch's [out, in]); biases as
    [1, out].
    """
    def linear(k, fan_in, fan_out):
        kw, kb = jax.random.split(k)
        bound = 1.0 / jnp.sqrt(fan_in)
        w = jax.random.uniform(kw, (fan_in, fan_out), dtype, -bound, bound)
        b = jax.random.uniform(kb, (1, fan_out), dtype, -bound, bound)
        return w, b

    k1, k2 = jax.random.split(key)
    w1, b1 = linear(k1, latent_dims, h_dim)   # fc_layer Linear
    w2, b2 = linear(k2, h_dim, n_dims)        # bernoulli_dec Linear
    return (w1, b1, w2, b2)


def reference_forward(z, params):
    w1, b1, w2, b2 = (p.astype(jnp.float32) for p in params)
    x = jnp.maximum(z @ w1 + b1, 0.0)
    return jax.nn.sigmoid(x @ w2 + b2)


if __name__ == "__main__":
    # Small shapes consistent with the module (z is [batch, latent_dims]).
    B, latent_dims, h_dim, n_dims = 64, 16, 20, 784

    key = jax.random.PRNGKey(0)
    kz, kp = jax.random.split(key)
    z = jax.random.normal(kz, (B, latent_dims), jnp.float32)
    params = init_params(kp, latent_dims, h_dim, n_dims, dtype=jnp.float32)

    ref = reference_forward(z, params)

    # Default path: bf16 weights (MXU-native), f32 biases + f32 accumulation.
    padded_bf16, nd = prepare_params(params, weight_dtype=jnp.bfloat16)
    out_bf16 = jax.block_until_ready(one_layer_decoder(z, padded_bf16, nd))
    assert out_bf16.shape == (B, n_dims)
    assert jnp.allclose(out_bf16, ref, atol=2e-2, rtol=2e-2)

    # f32-weight path: tight numerical check of the kernel itself.
    padded_f32, nd = prepare_params(params, weight_dtype=jnp.float32)
    out_f32 = jax.block_until_ready(one_layer_decoder(z, padded_f32, nd))
    assert out_f32.shape == (B, n_dims)
    assert jnp.allclose(out_f32, ref, atol=1e-5, rtol=1e-5)

    print("KERNEL_OK")
</pallas_src>

<mosaic_0001>
module attributes {stable_mosaic.version = 11 : i64} {
  func.func @decoder_kernel(%arg0: i32, %arg1: memref<64x16xf32, #tpu.memory_space<vmem>>, %arg2: memref<16x32xbf16, #tpu.memory_space<vmem>>, %arg3: memref<1x32xf32, #tpu.memory_space<vmem>>, %arg4: memref<32x896xbf16, #tpu.memory_space<vmem>>, %arg5: memref<1x896xf32, #tpu.memory_space<vmem>>, %arg6: memref<64x896xf32, #tpu.memory_space<vmem>>) attributes {dimension_semantics = [#tpu.dimension_semantics<parallel>], iteration_bounds = array<i64: 1>, scalar_prefetch = 0 : i64, scratch_operands = 0 : i64, tpu.core_type = #tpu.core_type<tc>, window_params = [{transform_indices = @transform_0, window_bounds = array<i64: 64, 16>}, {pipeline_mode = #tpu.pipeline_mode<synchronous>, transform_indices = @transform_1, window_bounds = array<i64: 16, 32>}, {pipeline_mode = #tpu.pipeline_mode<synchronous>, transform_indices = @transform_2, window_bounds = array<i64: 1, 32>}, {pipeline_mode = #tpu.pipeline_mode<synchronous>, transform_indices = @transform_3, window_bounds = array<i64: 32, 896>}, {pipeline_mode = #tpu.pipeline_mode<synchronous>, transform_indices = @transform_4, window_bounds = array<i64: 1, 896>}, {transform_indices = @transform_5, window_bounds = array<i64: 64, 896>}]} {
    %c0 = arith.constant 0 : index
    %c0_0 = arith.constant 0 : index
    %0 = vector.load %arg1[%c0, %c0_0] : memref<64x16xf32, #tpu.memory_space<vmem>>, vector<64x16xf32>
    %1 = arith.truncf %0 : vector<64x16xf32> to vector<64x16xbf16>
    %c0_1 = arith.constant 0 : index
    %c0_2 = arith.constant 0 : index
    %2 = vector.load %arg2[%c0_1, %c0_2] : memref<16x32xbf16, #tpu.memory_space<vmem>>, vector<16x32xbf16>
    %cst = arith.constant dense<0.000000e+00> : vector<64x32xf32>
    %3 = tpu.matmul %1, %2, %cst {dimension_numbers = #tpu.dot_dimension_numbers<[1], [0], [0], [1], [0, 0, 1, 1], [], []>} : vector<64x16xbf16>, vector<16x32xbf16>, vector<64x32xf32> -> vector<64x32xf32>
    %c0_3 = arith.constant 0 : index
    %c0_4 = arith.constant 0 : index
    %4 = vector.load %arg3[%c0_3, %c0_4] : memref<1x32xf32, #tpu.memory_space<vmem>>, vector<1x32xf32>
    %5 = vector.broadcast %4 : vector<1x32xf32> to vector<64x32xf32>
    %6 = arith.addf %3, %5 : vector<64x32xf32>
    %cst_5 = arith.constant 0.000000e+00 : f32
    %7 = vector.broadcast %cst_5 : f32 to vector<64x32xf32>
    %8 = arith.maximumf %6, %7 : vector<64x32xf32>
    %9 = arith.truncf %8 : vector<64x32xf32> to vector<64x32xbf16>
    %c0_6 = arith.constant 0 : index
    %c0_7 = arith.constant 0 : index
    %10 = vector.load %arg4[%c0_6, %c0_7] : memref<32x896xbf16, #tpu.memory_space<vmem>>, vector<32x896xbf16>
    %cst_8 = arith.constant dense<0.000000e+00> : vector<64x896xf32>
    %11 = tpu.matmul %9, %10, %cst_8 {dimension_numbers = #tpu.dot_dimension_numbers<[1], [0], [0], [1], [0, 0, 1, 1], [], []>} : vector<64x32xbf16>, vector<32x896xbf16>, vector<64x896xf32> -> vector<64x896xf32>
    %c0_9 = arith.constant 0 : index
    %c0_10 = arith.constant 0 : index
    %12 = vector.load %arg5[%c0_9, %c0_10] : memref<1x896xf32, #tpu.memory_space<vmem>>, vector<1x896xf32>
    %13 = vector.broadcast %12 : vector<1x896xf32> to vector<64x896xf32>
    %14 = arith.addf %11, %13 : vector<64x896xf32>
    %15 = arith.negf %14 : vector<64x896xf32>
    %16 = math.exp %15 : vector<64x896xf32>
    %cst_11 = arith.constant 1.000000e+00 : f32
    %17 = vector.broadcast %cst_11 : f32 to vector<64x896xf32>
    %18 = arith.addf %17, %16 : vector<64x896xf32>
    %19 = arith.divf %17, %18 : vector<64x896xf32>
    %c0_12 = arith.constant 0 : index
    %c0_13 = arith.constant 0 : index
    %20 = vector.load %arg6[%c0_12, %c0_13] : memref<64x896xf32, #tpu.memory_space<vmem>>, vector<64x896xf32>
    tpu.vector_store %arg6[%c0_12, %c0_13], %19 {strides = array<i32>} : memref<64x896xf32, #tpu.memory_space<vmem>>, vector<64x896xf32>,
    return
  }
  func.func @transform_0(%arg0: i32) -> (i32, i32) {
    %c0_i32 = arith.constant 0 : i32
    %c0_i32_0 = arith.constant 0 : i32
    return %arg0, %c0_i32 : i32, i32
  }
  func.func @transform_1(%arg0: i32) -> (i32, i32) {
    %c0_i32 = arith.constant 0 : i32
    %c0_i32_0 = arith.constant 0 : i32
    %c0_i32_1 = arith.constant 0 : i32
    return %c0_i32, %c0_i32_0 : i32, i32
  }
  func.func @transform_2(%arg0: i32) -> (i32, i32) {
    %c0_i32 = arith.constant 0 : i32
    %c0_i32_0 = arith.constant 0 : i32
    %c0_i32_1 = arith.constant 0 : i32
    return %c0_i32, %c0_i32_0 : i32, i32
  }
  func.func @transform_3(%arg0: i32) -> (i32, i32) {
    %c0_i32 = arith.constant 0 : i32
    %c0_i32_0 = arith.constant 0 : i32
    %c0_i32_1 = arith.constant 0 : i32
    return %c0_i32, %c0_i32_0 : i32, i32
  }
  func.func @transform_4(%arg0: i32) -> (i32, i32) {
    %c0_i32 = arith.constant 0 : i32
    %c0_i32_0 = arith.constant 0 : i32
    %c0_i32_1 = arith.constant 0 : i32
    return %c0_i32, %c0_i32_0 : i32, i32
  }
  func.func @transform_5(%arg0: i32) -> (i32, i32) {
    %c0_i32 = arith.constant 0 : i32
    %c0_i32_0 = arith.constant 0 : i32
    return %arg0, %c0_i32 : i32, i32
  }
}

</mosaic_0001>

<llo_original>
// kernel: one_layer_decoder.1
$region0: #{one_layer_decoder.1}
  #allocation0 [shape = 'u32[]', space=smem, size = 0x4, offset = 0x4, fixed_abs, tag = 'smem constant byte address 0x4 - core index']
  #allocation1 [shape = 'u32[72,128]{1,0:T(1,128)}', space=vmem, size = 0x9000, scoped, tag = 'internal scratch']
  %s0 = inlined_call_operand.vmem [shape: f32[64,16], index: 0, kind: input, shape index: {}]
  %s1 = inlined_call_operand.vmem [shape: bf16[16,32], index: 1, kind: input, shape index: {}]
  %s2 = inlined_call_operand.vmem [shape: f32[1,32], index: 2, kind: input, shape index: {}]
  %s3 = inlined_call_operand.hbm [shape: bf16[32,896], index: 3, kind: input, shape index: {}]
  %s4 = inlined_call_operand.vmem [shape: f32[1,896], index: 4, kind: input, shape index: {}]
  %s5 = inlined_call_operand.hbm [shape: f32[64,896], index: 5, kind: output, shape index: {}]
  %s6 = sld [smem:[#allocation0]]
  $region34: #{one_layer_decoder.1} parent=0
    _
  %s8 = ssub.s32 1, %s6
  %s9 = scalar_select 0, %s8, %s6
  $region1: #{one_layer_decoder.1} parent=0
    #allocation2 [shape = 'u8[57344]{0}', space=vmem, size = 0xe000, scoped, tag = 'input window, operand 3, single buffered']
    #allocation3 [shape = 's32[1]{0}', space=sflag, size = 0x4, scoped, tag = 'scoped memory for one_layer_decoder.1']
    #allocation4 [shape = 's32[1]{0}', space=sflag, size = 0x4, scoped, tag = 'scoped memory for one_layer_decoder.1']
    #allocation5 [shape = 'u8[229376]{0}', space=vmem, size = 0x38000, scoped, tag = 'output window, operand 0, single buffered']
    %10 = vsyncpa [#allocation3], 0
    %11 = vsyncpa [#allocation4], 0
    // Predicated region
    $region2: #{one_layer_decoder.1} parent=1 // pred_check
      _
    $region3: #{one_layer_decoder.1} parent=1 // pred_check_branch
      %13 = sbr.rel (0) target = $region5
    $region4: #{one_layer_decoder.1} parent=1 // pred_region
      _
    $region5: #{one_layer_decoder.1} parent=1 // pred_fallthru
      _
    // Predicated region
    $region6: #{one_layer_decoder.1} parent=1 // pred_check
      _
    $region7: #{one_layer_decoder.1} parent=1 // pred_check_branch
      %15 = sbr.rel (0) target = $region9
    $region8: #{one_layer_decoder.1} parent=1 // pred_region
      _
    $region9: #{one_layer_decoder.1} parent=1 // pred_fallthru
      _
    // Predicated region
    $region10: #{one_layer_decoder.1} parent=1 // pred_check
      _
    $region11: #{one_layer_decoder.1} parent=1 // pred_check_branch
      %17 = sbr.rel (0) target = $region13
    $region12: #{one_layer_decoder.1} parent=1 // pred_region
      _
    $region13: #{one_layer_decoder.1} parent=1 // pred_fallthru
      _
    // Predicated region
    $region14: #{one_layer_decoder.1} parent=1 // pred_check
      _
    $region15: #{one_layer_decoder.1} parent=1 // pred_check_branch
      %19 = sbr.rel (0) target = $region17
    $region16: #{one_layer_decoder.1} parent=1 // pred_region
      %21 = vsyncadd [#allocation3], 0
      %s22 = sshll.u32 %s3, 4
      %s23 = int_to_ptr.hbm [resolvable:$true] %s22
      %s24 = sshll.u32 [#allocation2], 4
      %s25 = int_to_ptr.vmem [resolvable:$true] %s24
      %30 = dma.hbm_to_vmem [thread:$0]  %s23, 1792, %s25, [#allocation3], 448, 448, 28
    $region17: #{one_layer_decoder.1} parent=1 // pred_fallthru
      _
    // Predicated region
    $region18: #{one_layer_decoder.1} parent=1 // pred_check
      _
    $region19: #{one_layer_decoder.1} parent=1 // pred_check_branch
      %32 = sbr.rel (0) target = $region21
    $region20: #{one_layer_decoder.1} parent=1 // pred_region
      _
    $region21: #{one_layer_decoder.1} parent=1 // pred_fallthru
      _
    // Predicated region
    $region22: #{one_layer_decoder.1} parent=1 // pred_check
      _
    $region23: #{one_layer_decoder.1} parent=1 // pred_check_branch
      %34 = sbr.rel (0) target = $region25
    $region24: #{one_layer_decoder.1} parent=1 // pred_region
      %36 = dma.done [#allocation3], 1792
    $region25: #{one_layer_decoder.1} parent=1 // pred_fallthru
      _
    %v38 = vld [vmem:[%s0] sm:$0xff]
    %v39 = vld [vmem:[%s0 + $0x8] sm:$0xff]
    %v40 = vld [vmem:[%s0 + $0x10] sm:$0xff]
    %v41 = vld [vmem:[%s0 + $0x18] sm:$0xff]
    %v42 = vld [vmem:[%s0 + $0x20] sm:$0xff]
    %v43 = vld [vmem:[%s0 + $0x28] sm:$0xff]
    %v44 = vld [vmem:[%s0 + $0x30] sm:$0xff]
    %v45 = vld [vmem:[%s0 + $0x38] sm:$0xff]
    %v46 = vpack.c.bf16 %v39, %v38
    %v47 = vpack.c.bf16 %v41, %v40
    %v48 = vpack.c.bf16 %v43, %v42
    %v49 = vpack.c.bf16 %v45, %v44
    %v50 = vld [vmem:[%s1] sm:$0xf]
    %v51 = vld [vmem:[%s1 + $0x4] sm:$0xf]
    %v52 = vld [vmem:[%s2] sm:$0x1]
    %v54 = vperm.slane %v52, 0
    %v58 = vunpack.c.l.b16 %v50
    %v59 = vunpack.c.l.b16 %v51
    %v60 = vpack.c.b16 %v59, %v58
    %vm62 = vcmask 130048
    %v64 = vsel %vm62, %v46, 0
    %v67 = vsel %vm62, %v47, 0
    %v70 = vsel %vm62, %v48, 0
    %v73 = vsel %vm62, %v49, 0
    %75 = vmatpush.bf16.msra.mxu0 0
    %76 = vmatpush.bf16.msra.mxu0 0
    %77 = vmatpush.bf16.msra.mxu0 0
    %78 = vmatpush.bf16.msra.mxu0 0
    %79 = vmatpush.bf16.msra.mxu0 0
    %80 = vmatpush.bf16.msra.mxu0 0
    %81 = vmatpush.bf16.msra.mxu0 0
    %82 = vmatpush.bf16.msra.mxu0 %v60
    %83 = vmatmul.bf16.gmra.mxu0 %v64
    %v84 = vpop.f32.mrf.mxu0
    %v85 = vadd.f32 %v54, %v84
    %v86 = vpop.f32.mrf.mxu0
    %v87 = vadd.f32 %v54, %v86
    %88 = vmatmul.bf16.gmra.mxu0 %v67
    %v89 = vpop.f32.mrf.mxu0
    %v90 = vadd.f32 %v54, %v89
    %v91 = vpop.f32.mrf.mxu0
    %v92 = vadd.f32 %v54, %v91
    %93 = vmatmul.bf16.gmra.mxu0 %v70
    %v94 = vpop.f32.mrf.mxu0
    %v95 = vadd.f32 %v54, %v94
    %v96 = vpop.f32.mrf.mxu0
    %v97 = vadd.f32 %v54, %v96
    %98 = vmatmul.bf16.gmra.mxu0 %v73
    %v99 = vpop.f32.mrf.mxu0
    %v100 = vadd.f32 %v54, %v99
    %v101 = vpop.f32.mrf.mxu0
    %v102 = vadd.f32 %v54, %v101
    %103 = vdwg.mxu0
    %v104 = vmax.f32 %v85, 0.0
    %v105 = vmax.f32 %v87, 0.0
    %v106 = vmax.f32 %v90, 0.0
    %v107 = vmax.f32 %v92, 0.0
    %v108 = vmax.f32 %v95, 0.0
    %v109 = vmax.f32 %v97, 0.0
    %v110 = vmax.f32 %v100, 0.0
    %v111 = vmax.f32 %v102, 0.0
    %v112 = vpack.c.bf16 %v105, %v104
    %v113 = vpack.c.bf16 %v107, %v106
    %v114 = vpack.c.bf16 %v109, %v108
    %v115 = vpack.c.bf16 %v111, %v110
    %v116 = vld [vmem:[#allocation2] sm:$0xff]
    %v117 = vld [vmem:[#allocation2 + $0x8] sm:$0xff]
    %v118 = vld [vmem:[#allocation2 + $0x10] sm:$0xff]
    %v119 = vld [vmem:[#allocation2 + $0x18] sm:$0xf]
    %v120 = vld [vmem:[#allocation2 + $0x1c] sm:$0xff]
    %v121 = vld [vmem:[#allocation2 + $0x24] sm:$0xff]
    %v122 = vld [vmem:[#allocation2 + $0x2c] sm:$0xff]
    %v123 = vld [vmem:[#allocation2 + $0x34] sm:$0xf]
    %v124 = vld [vmem:[#allocation2 + $0x38] sm:$0xff]
    %v125 = vld [vmem:[#allocation2 + $0x40] sm:$0xff]
    %v126 = vld [vmem:[#allocation2 + $0x48] sm:$0xff]
    %v127 = vld [vmem:[#allocation2 + $0x50] sm:$0xf]
    %v128 = vld [vmem:[#allocation2 + $0x54] sm:$0xff]
    %v129 = vld [vmem:[#allocation2 + $0x5c] sm:$0xff]
    %v130 = vld [vmem:[#allocation2 + $0x64] sm:$0xff]
    %v131 = vld [vmem:[#allocation2 + $0x6c] sm:$0xf]
    %v132 = vld [vmem:[%s4] sm:$0xff]
    %v134 = vperm.slane %v132, 0
    %v135 = vperm.slane %v132, 1
    %v136 = vperm.slane %v132, 2
    %v137 = vperm.slane %v132, 3
    %v138 = vperm.slane %v132, 4
    %v139 = vperm.slane %v132, 5
    %v140 = vperm.slane %v132, 6
    %v164 = vunpack.c.l.b16 %v116
    %v165 = vunpack.c.h.b16 %v116
    %v166 = vunpack.c.l.b16 %v117
    %v167 = vunpack.c.h.b16 %v117
    %v168 = vunpack.c.l.b16 %v118
    %v169 = vunpack.c.h.b16 %v118
    %v170 = vunpack.c.l.b16 %v119
    %v171 = vunpack.c.l.b16 %v120
    %v172 = vunpack.c.h.b16 %v120
    %v173 = vunpack.c.l.b16 %v121
    %v174 = vunpack.c.h.b16 %v121
    %v175 = vunpack.c.l.b16 %v122
    %v176 = vunpack.c.h.b16 %v122
    %v177 = vunpack.c.l.b16 %v123
    %v178 = vunpack.c.l.b16 %v124
    %v179 = vunpack.c.h.b16 %v124
    %v180 = vunpack.c.l.b16 %v125
    %v181 = vunpack.c.h.b16 %v125
    %v182 = vunpack.c.l.b16 %v126
    %v183 = vunpack.c.h.b16 %v126
    %v184 = vunpack.c.l.b16 %v127
    %v185 = vunpack.c.l.b16 %v128
    %v186 = vunpack.c.h.b16 %v128
    %v187 = vunpack.c.l.b16 %v129
    %v188 = vunpack.c.h.b16 %v129
    %v189 = vunpack.c.l.b16 %v130
    %v190 = vunpack.c.h.b16 %v130
    %v191 = vunpack.c.l.b16 %v131
    %v192 = vpack.c.b16 %v171, %v164
    %v193 = vpack.c.b16 %v172, %v165
    %v194 = vpack.c.b16 %v173, %v166
    %v195 = vpack.c.b16 %v174, %v167
    %v196 = vpack.c.b16 %v175, %v168
    %v197 = vpack.c.b16 %v176, %v169
    %v198 = vpack.c.b16 %v177, %v170
    %v199 = vpack.c.b16 %v185, %v178
    %v200 = vpack.c.b16 %v186, %v179
    %v201 = vpack.c.b16 %v187, %v180
    %v202 = vpack.c.b16 %v188, %v181
    %v203 = vpack.c.b16 %v189, %v182
    %v204 = vpack.c.b16 %v190, %v183
    %v205 = vpack.c.b16 %v191, %v184
    %vm220 = vcmask 261120
    %v222 = vsel %vm220, %v112, 0
    %v225 = vsel %vm220, %v113, 0
    %v228 = vsel %vm220, %v114, 0
    %v231 = vsel %vm220, %v115, 0
    %233 = vmatpush.bf16.msra.mxu0 0
    %234 = vmatpush.bf16.msra.mxu0 0
    %235 = vmatpush.bf16.msra.mxu0 0
    %236 = vmatpush.bf16.msra.mxu0 0
    %237 = vmatpush.bf16.msra.mxu0 0
    %238 = vmatpush.bf16.msra.mxu0 0
    %239 = vmatpush.bf16.msra.mxu0 %v199
    %240 = vmatpush.bf16.msra.mxu0 %v192
    %241 = vmatmul.bf16.gmra.mxu0 %v222
    %v242 = vpop.f32.mrf.mxu0
    %v243 = vadd.f32 %v134, %v242
    %v244 = vpop.f32.mrf.mxu0
    %v245 = vadd.f32 %v134, %v244
    %246 = vmatmul.bf16.gmra.mxu0 %v225
    %v247 = vpop.f32.mrf.mxu0
    %v248 = vadd.f32 %v134, %v247
    %v249 = vpop.f32.mrf.mxu0
    %v250 = vadd.f32 %v134, %v249
    %251 = vmatmul.bf16.gmra.mxu0 %v228
    %v252 = vpop.f32.mrf.mxu0
    %v253 = vadd.f32 %v134, %v252
    %v254 = vpop.f32.mrf.mxu0
    %v255 = vadd.f32 %v134, %v254
    %256 = vmatmul.bf16.gmra.mxu0 %v231
    %v257 = vpop.f32.mrf.mxu0
    %v258 = vadd.f32 %v134, %v257
    %v259 = vpop.f32.mrf.mxu0
    %v260 = vadd.f32 %v134, %v259
    %261 = vdwg.mxu0
    %262 = vmatpush.bf16.msra.mxu0 0
    %263 = vmatpush.bf16.msra.mxu0 0
    %264 = vmatpush.bf16.msra.mxu0 0
    %265 = vmatpush.bf16.msra.mxu0 0
    %266 = vmatpush.bf16.msra.mxu0 0
    %267 = vmatpush.bf16.msra.mxu0 0
    %268 = vmatpush.bf16.msra.mxu0 %v200
    %269 = vmatpush.bf16.msra.mxu0 %v193
    %270 = vmatmul.bf16.gmra.mxu0 %v222
    %v271 = vpop.f32.mrf.mxu0
    %v272 = vadd.f32 %v135, %v271
    %v273 = vpop.f32.mrf.mxu0
    %v274 = vadd.f32 %v135, %v273
    %275 = vmatmul.bf16.gmra.mxu0 %v225
    %v276 = vpop.f32.mrf.mxu0
    %v277 = vadd.f32 %v135, %v276
    %v278 = vpop.f32.mrf.mxu0
    %v279 = vadd.f32 %v135, %v278
    %280 = vmatmul.bf16.gmra.mxu0 %v228
    %v281 = vpop.f32.mrf.mxu0
    %v282 = vadd.f32 %v135, %v281
    %v283 = vpop.f32.mrf.mxu0
    %v284 = vadd.f32 %v135, %v283
    %285 = vmatmul.bf16.gmra.mxu0 %v231
    %v286 = vpop.f32.mrf.mxu0
    %v287 = vadd.f32 %v135, %v286
    %v288 = vpop.f32.mrf.mxu0
    %v289 = vadd.f32 %v135, %v288
    %290 = vdwg.mxu0
    %291 = vmatpush.bf16.msra.mxu0 0
    %292 = vmatpush.bf16.msra.mxu0 0
    %293 = vmatpush.bf16.msra.mxu0 0
    %294 = vmatpush.bf16.msra.mxu0 0
    %295 = vmatpush.bf16.msra.mxu0 0
    %296 = vmatpush.bf16.msra.mxu0 0
    %297 = vmatpush.bf16.msra.mxu0 %v201
    %298 = vmatpush.bf16.msra.mxu0 %v194
    %299 = vmatmul.bf16.gmra.mxu0 %v222
    %v300 = vpop.f32.mrf.mxu0
    %v301 = vadd.f32 %v136, %v300
    %v302 = vpop.f32.mrf.mxu0
    %v303 = vadd.f32 %v136, %v302
    %304 = vmatmul.bf16.gmra.mxu0 %v225
    %v305 = vpop.f32.mrf.mxu0
    %v306 = vadd.f32 %v136, %v305
    %v307 = vpop.f32.mrf.mxu0
    %v308 = vadd.f32 %v136, %v307
    %309 = vmatmul.bf16.gmra.mxu0 %v228
    %v310 = vpop.f32.mrf.mxu0
    %v311 = vadd.f32 %v136, %v310
    %v312 = vpop.f32.mrf.mxu0
    %v313 = vadd.f32 %v136, %v312
    %314 = vmatmul.bf16.gmra.mxu0 %v231
    %v315 = vpop.f32.mrf.mxu0
    %v316 = vadd.f32 %v136, %v315
    %v317 = vpop.f32.mrf.mxu0
    %v318 = vadd.f32 %v136, %v317
    %319 = vdwg.mxu0
    %320 = vmatpush.bf16.msra.mxu0 0
    %321 = vmatpush.bf16.msra.mxu0 0
    %322 = vmatpush.bf16.msra.mxu0 0
    %323 = vmatpush.bf16.msra.mxu0 0
    %324 = vmatpush.bf16.msra.mxu0 0
    %325 = vmatpush.bf16.msra.mxu0 0
    %326 = vmatpush.bf16.msra.mxu0 %v202
    %327 = vmatpush.bf16.msra.mxu0 %v195
    %328 = vmatmul.bf16.gmra.mxu0 %v222
    %v329 = vpop.f32.mrf.mxu0
    %v330 = vadd.f32 %v137, %v329
    %v331 = vpop.f32.mrf.mxu0
    %v332 = vadd.f32 %v137, %v331
    %333 = vmatmul.bf16.gmra.mxu0 %v225
    %v334 = vpop.f32.mrf.mxu0
    %v335 = vadd.f32 %v137, %v334
    %v336 = vpop.f32.mrf.mxu0
    %v337 = vadd.f32 %v137, %v336
    %338 = vmatmul.bf16.gmra.mxu0 %v228
    %v339 = vpop.f32.mrf.mxu0
    %v340 = vadd.f32 %v137, %v339
    %v341 = vpop.f32.mrf.mxu0
    %v342 = vadd.f32 %v137, %v341
    %343 = vmatmul.bf16.gmra.mxu0 %v231
    %v344 = vpop.f32.mrf.mxu0
    %v345 = vadd.f32 %v137, %v344
    %v346 = vpop.f32.mrf.mxu0
    %v347 = vadd.f32 %v137, %v346
    %348 = vdwg.mxu0
    %349 = vmatpush.bf16.msra.mxu0 0
    %350 = vmatpush.bf16.msra.mxu0 0
    %351 = vmatpush.bf16.msra.mxu0 0
    %352 = vmatpush.bf16.msra.mxu0 0
    %353 = vmatpush.bf16.msra.mxu0 0
    %354 = vmatpush.bf16.msra.mxu0 0
    %355 = vmatpush.bf16.msra.mxu0 %v203
    %356 = vmatpush.bf16.msra.mxu0 %v196
    %357 = vmatmul.bf16.gmra.mxu0 %v222
    %v358 = vpop.f32.mrf.mxu0
    %v359 = vadd.f32 %v138, %v358
    %v360 = vpop.f32.mrf.mxu0
    %v361 = vadd.f32 %v138, %v360
    %362 = vmatmul.bf16.gmra.mxu0 %v225
    %v363 = vpop.f32.mrf.mxu0
    %v364 = vadd.f32 %v138, %v363
    %v365 = vpop.f32.mrf.mxu0
    %v366 = vadd.f32 %v138, %v365
    %367 = vmatmul.bf16.gmra.mxu0 %v228
    %v368 = vpop.f32.mrf.mxu0
    %v369 = vadd.f32 %v138, %v368
    %v370 = vpop.f32.mrf.mxu0
    %v371 = vadd.f32 %v138, %v370
    %372 = vmatmul.bf16.gmra.mxu0 %v231
    %v373 = vpop.f32.mrf.mxu0
    %v374 = vadd.f32 %v138, %v373
    %v375 = vpop.f32.mrf.mxu0
    %v376 = vadd.f32 %v138, %v375
    %377 = vdwg.mxu0
    %378 = vmatpush.bf16.msra.mxu0 0
    %379 = vmatpush.bf16.msra.mxu0 0
    %380 = vmatpush.bf16.msra.mxu0 0
    %381 = vmatpush.bf16.msra.mxu0 0
    %382 = vmatpush.bf16.msra.mxu0 0
    %383 = vmatpush.bf16.msra.mxu0 0
    %384 = vmatpush.bf16.msra.mxu0 %v204
    %385 = vmatpush.bf16.msra.mxu0 %v197
    %386 = vmatmul.bf16.gmra.mxu0 %v222
    %v387 = vpop.f32.mrf.mxu0
    %v388 = vadd.f32 %v139, %v387
    %v389 = vpop.f32.mrf.mxu0
    %v390 = vadd.f32 %v139, %v389
    %391 = vmatmul.bf16.gmra.mxu0 %v225
    %v392 = vpop.f32.mrf.mxu0
    %v393 = vadd.f32 %v139, %v392
    %v394 = vpop.f32.mrf.mxu0
    %v395 = vadd.f32 %v139, %v394
    %396 = vmatmul.bf16.gmra.mxu0 %v228
    %v397 = vpop.f32.mrf.mxu0
    %v398 = vadd.f32 %v139, %v397
    %v399 = vpop.f32.mrf.mxu0
    %v400 = vadd.f32 %v139, %v399
    %401 = vmatmul.bf16.gmra.mxu0 %v231
    %v402 = vpop.f32.mrf.mxu0
    %v403 = vadd.f32 %v139, %v402
    %v404 = vpop.f32.mrf.mxu0
    %v405 = vadd.f32 %v139, %v404
    %406 = vdwg.mxu0
    %407 = vmatpush.bf16.msra.mxu0 0
    %408 = vmatpush.bf16.msra.mxu0 0
    %409 = vmatpush.bf16.msra.mxu0 0
    %410 = vmatpush.bf16.msra.mxu0 0
    %411 = vmatpush.bf16.msra.mxu0 0
    %412 = vmatpush.bf16.msra.mxu0 0
    %413 = vmatpush.bf16.msra.mxu0 %v205
    %414 = vmatpush.bf16.msra.mxu0 %v198
    %415 = vmatmul.bf16.gmra.mxu0 %v222
    %v416 = vpop.f32.mrf.mxu0
    %v417 = vadd.f32 %v140, %v416
    %v418 = vpop.f32.mrf.mxu0
    %v419 = vadd.f32 %v140, %v418
    %420 = vmatmul.bf16.gmra.mxu0 %v225
    %v421 = vpop.f32.mrf.mxu0
    %v422 = vadd.f32 %v140, %v421
    %v423 = vpop.f32.mrf.mxu0
    %v424 = vadd.f32 %v140, %v423
    %425 = vmatmul.bf16.gmra.mxu0 %v228
    %v426 = vpop.f32.mrf.mxu0
    %v427 = vadd.f32 %v140, %v426
    %v428 = vpop.f32.mrf.mxu0
    %v429 = vadd.f32 %v140, %v428
    %430 = vmatmul.bf16.gmra.mxu0 %v231
    %v431 = vpop.f32.mrf.mxu0
    %v432 = vadd.f32 %v140, %v431
    %v433 = vpop.f32.mrf.mxu0
    %v434 = vadd.f32 %v140, %v433
    %435 = vdwg.mxu0
    %v436 = vxor.u32 %v243, 2147483648
    %v437 = vxor.u32 %v272, 2147483648
    %v438 = vxor.u32 %v301, 2147483648
    %v439 = vxor.u32 %v330, 2147483648
    %v440 = vxor.u32 %v359, 2147483648
    %v441 = vxor.u32 %v388, 2147483648
    %v442 = vxor.u32 %v417, 2147483648
    %v443 = vxor.u32 %v245, 2147483648
    %v444 = vxor.u32 %v274, 2147483648
    %v445 = vxor.u32 %v303, 2147483648
    %v446 = vxor.u32 %v332, 2147483648
    %v447 = vxor.u32 %v361, 2147483648
    %v448 = vxor.u32 %v390, 2147483648
    %v449 = vxor.u32 %v419, 2147483648
    %v450 = vxor.u32 %v248, 2147483648
    %v451 = vxor.u32 %v277, 2147483648
    %v452 = vxor.u32 %v306, 2147483648
    %v453 = vxor.u32 %v335, 2147483648
    %v454 = vxor.u32 %v364, 2147483648
    %v455 = vxor.u32 %v393, 2147483648
    %v456 = vxor.u32 %v422, 2147483648
    %v457 = vxor.u32 %v250, 2147483648
    %v458 = vxor.u32 %v279, 2147483648
    %v459 = vxor.u32 %v308, 2147483648
    %v460 = vxor.u32 %v337, 2147483648
    %v461 = vxor.u32 %v366, 2147483648
    %v462 = vxor.u32 %v395, 2147483648
    %v463 = vxor.u32 %v424, 2147483648
    %v464 = vxor.u32 %v253, 2147483648
    %v465 = vxor.u32 %v282, 2147483648
    %v466 = vxor.u32 %v311, 2147483648
    %v467 = vxor.u32 %v340, 2147483648
    %v468 = vxor.u32 %v369, 2147483648
    %v469 = vxor.u32 %v398, 2147483648
    %v470 = vxor.u32 %v427, 2147483648
    %v471 = vxor.u32 %v255, 2147483648
    %v472 = vxor.u32 %v284, 2147483648
    %v473 = vxor.u32 %v313, 2147483648
    %v474 = vxor.u32 %v342, 2147483648
    %v475 = vxor.u32 %v371, 2147483648
    %v476 = vxor.u32 %v400, 2147483648
    %v477 = vxor.u32 %v429, 2147483648
    %v478 = vxor.u32 %v258, 2147483648
    %v479 = vxor.u32 %v287, 2147483648
    %v480 = vxor.u32 %v316, 2147483648
    %v481 = vxor.u32 %v345, 2147483648
    %v482 = vxor.u32 %v374, 2147483648
    %v483 = vxor.u32 %v403, 2147483648
    %v484 = vxor.u32 %v432, 2147483648
    %v485 = vxor.u32 %v260, 2147483648
    %v486 = vxor.u32 %v289, 2147483648
    %v487 = vxor.u32 %v318, 2147483648
    %v488 = vxor.u32 %v347, 2147483648
    %v489 = vxor.u32 %v376, 2147483648
    %v490 = vxor.u32 %v405, 2147483648
    %v491 = vxor.u32 %v434, 2147483648
    %v492 = vmul.f32 %v436, 1.442695
    %v493 = vpow.pop %v492
    %v494 = vmul.f32 %v437, 1.442695
    %v495 = vpow.pop %v494
    %v496 = vmul.f32 %v438, 1.442695
    %v497 = vpow.pop %v496
    %v498 = vmul.f32 %v439, 1.442695
    %v499 = vpow.pop %v498
    %v500 = vmul.f32 %v440, 1.442695
    %v501 = vpow.pop %v500
    %v502 = vmul.f32 %v441, 1.442695
    %v503 = vpow.pop %v502
    %v504 = vmul.f32 %v442, 1.442695
    %v505 = vpow.pop %v504
    %v506 = vmul.f32 %v443, 1.442695
    %v507 = vpow.pop %v506
    %v508 = vmul.f32 %v444, 1.442695
    %v509 = vpow.pop %v508
    %v510 = vmul.f32 %v445, 1.442695
    %v511 = vpow.pop %v510
    %v512 = vmul.f32 %v446, 1.442695
    %v513 = vpow.pop %v512
    %v514 = vmul.f32 %v447, 1.442695
    %v515 = vpow.pop %v514
    %v516 = vmul.f32 %v448, 1.442695
    %v517 = vpow.pop %v516
    %v518 = vmul.f32 %v449, 1.442695
    %v519 = vpow.pop %v518
    %v520 = vmul.f32 %v450, 1.442695
    %v521 = vpow.pop %v520
    %v522 = vmul.f32 %v451, 1.442695
    %v523 = vpow.pop %v522
    %v524 = vmul.f32 %v452, 1.442695
    %v525 = vpow.pop %v524
    %v526 = vmul.f32 %v453, 1.442695
    %v527 = vpow.pop %v526
    %v528 = vmul.f32 %v454, 1.442695
    %v529 = vpow.pop %v528
    %v530 = vmul.f32 %v455, 1.442695
    %v531 = vpow.pop %v530
    %v532 = vmul.f32 %v456, 1.442695
    %v533 = vpow.pop %v532
    %v534 = vmul.f32 %v457, 1.442695
    %v535 = vpow.pop %v534
    %v536 = vmul.f32 %v458, 1.442695
    %v537 = vpow.pop %v536
    %v538 = vmul.f32 %v459, 1.442695
    %v539 = vpow.pop %v538
    %v540 = vmul.f32 %v460, 1.442695
    %v541 = vpow.pop %v540
    %v542 = vmul.f32 %v461, 1.442695
    %v543 = vpow.pop %v542
    %v544 = vmul.f32 %v462, 1.442695
    %v545 = vpow.pop %v544
    %v546 = vmul.f32 %v463, 1.442695
    %v547 = vpow.pop %v546
    %v548 = vmul.f32 %v464, 1.442695
    %v549 = vpow.pop %v548
    %v550 = vmul.f32 %v465, 1.442695
    %v551 = vpow.pop %v550
    %v552 = vmul.f32 %v466, 1.442695
    %v553 = vpow.pop %v552
    %v554 = vmul.f32 %v467, 1.442695
    %v555 = vpow.pop %v554
    %v556 = vmul.f32 %v468, 1.442695
    %v557 = vpow.pop %v556
    %v558 = vmul.f32 %v469, 1.442695
    %v559 = vpow.pop %v558
    %v560 = vmul.f32 %v470, 1.442695
    %v561 = vpow.pop %v560
    %v562 = vmul.f32 %v471, 1.442695
    %v563 = vpow.pop %v562
    %v564 = vmul.f32 %v472, 1.442695
    %v565 = vpow.pop %v564
    %v566 = vmul.f32 %v473, 1.442695
    %v567 = vpow.pop %v566
    %v568 = vmul.f32 %v474, 1.442695
    %v569 = vpow.pop %v568
    %v570 = vmul.f32 %v475, 1.442695
    %v571 = vpow.pop %v570
    %v572 = vmul.f32 %v476, 1.442695
    %v573 = vpow.pop %v572
    %v574 = vmul.f32 %v477, 1.442695
    %v575 = vpow.pop %v574
    %v576 = vmul.f32 %v478, 1.442695
    %v577 = vpow.pop %v576
    %v578 = vmul.f32 %v479, 1.442695
    %v579 = vpow.pop %v578
    %v580 = vmul.f32 %v480, 1.442695
    %v581 = vpow.pop %v580
    %v582 = vmul.f32 %v481, 1.442695
    %v583 = vpow.pop %v582
    %v584 = vmul.f32 %v482, 1.442695
    %v585 = vpow.pop %v584
    %v586 = vmul.f32 %v483, 1.442695
    %v587 = vpow.pop %v586
    %v588 = vmul.f32 %v484, 1.442695
    %v589 = vpow.pop %v588
    %v590 = vmul.f32 %v485, 1.442695
    %v591 = vpow.pop %v590
    %v592 = vmul.f32 %v486, 1.442695
    %v593 = vpow.pop %v592
    %v594 = vmul.f32 %v487, 1.442695
    %v595 = vpow.pop %v594
    %v596 = vmul.f32 %v488, 1.442695
    %v597 = vpow.pop %v596
    %v598 = vmul.f32 %v489, 1.442695
    %v599 = vpow.pop %v598
    %v600 = vmul.f32 %v490, 1.442695
    %v601 = vpow.pop %v600
    %v602 = vmul.f32 %v491, 1.442695
    %v603 = vpow.pop %v602
    %v604 = vadd.f32 %v493, 1.0
    %v605 = vadd.f32 %v495, 1.0
    %v606 = vadd.f32 %v497, 1.0
    %v607 = vadd.f32 %v499, 1.0
    %v608 = vadd.f32 %v501, 1.0
    %v609 = vadd.f32 %v503, 1.0
    %v610 = vadd.f32 %v505, 1.0
    %v611 = vadd.f32 %v507, 1.0
    %v612 = vadd.f32 %v509, 1.0
    %v613 = vadd.f32 %v511, 1.0
    %v614 = vadd.f32 %v513, 1.0
    %v615 = vadd.f32 %v515, 1.0
    %v616 = vadd.f32 %v517, 1.0
    %v617 = vadd.f32 %v519, 1.0
    %v618 = vadd.f32 %v521, 1.0
    %v619 = vadd.f32 %v523, 1.0
    %v620 = vadd.f32 %v525, 1.0
    %v621 = vadd.f32 %v527, 1.0
    %v622 = vadd.f32 %v529, 1.0
    %v623 = vadd.f32 %v531, 1.0
    %v624 = vadd.f32 %v533, 1.0
    %v625 = vadd.f32 %v535, 1.0
    %v626 = vadd.f32 %v537, 1.0
    %v627 = vadd.f32 %v539, 1.0
    %v628 = vadd.f32 %v541, 1.0
    %v629 = vadd.f32 %v543, 1.0
    %v630 = vadd.f32 %v545, 1.0
    %v631 = vadd.f32 %v547, 1.0
    %v632 = vadd.f32 %v549, 1.0
    %v633 = vadd.f32 %v551, 1.0
    %v634 = vadd.f32 %v553, 1.0
    %v635 = vadd.f32 %v555, 1.0
    %v636 = vadd.f32 %v557, 1.0
    %v637 = vadd.f32 %v559, 1.0
    %v638 = vadd.f32 %v561, 1.0
    %v639 = vadd.f32 %v563, 1.0
    %v640 = vadd.f32 %v565, 1.0
    %v641 = vadd.f32 %v567, 1.0
    %v642 = vadd.f32 %v569, 1.0
    %v643 = vadd.f32 %v571, 1.0
    %v644 = vadd.f32 %v573, 1.0
    %v645 = vadd.f32 %v575, 1.0
    %v646 = vadd.f32 %v577, 1.0
    %v647 = vadd.f32 %v579, 1.0
    %v648 = vadd.f32 %v581, 1.0
    %v649 = vadd.f32 %v583, 1.0
    %v650 = vadd.f32 %v585, 1.0
    %v651 = vadd.f32 %v587, 1.0
    %v652 = vadd.f32 %v589, 1.0
    %v653 = vadd.f32 %v591, 1.0
    %v654 = vadd.f32 %v593, 1.0
    %v655 = vadd.f32 %v595, 1.0
    %v656 = vadd.f32 %v597, 1.0
    %v657 = vadd.f32 %v599, 1.0
    %v658 = vadd.f32 %v601, 1.0
    %v659 = vadd.f32 %v603, 1.0
    %v660 = vrcp.pop %v604
    %v661 = vmul.f32 %v604, %v660
    %v662 = vsub.f32 1.0, %v661
    %v663 = vmul.f32 %v660, %v662
    %v664 = vadd.f32 %v660, %v663
    %vm665 = vweird.f32 %v604
    %vm666 = vweird.f32 %v660
    %vm667 = vmor %vm665, %vm666
    %v668 = vsel %vm667, %v660, %v664
    %v669 = vand.u32 2147483647, %v604
    %vm670 = vcmp.eq.f32.partialorder %v669, 8.507059e+37
    %v671 = vand.u32 %v604, 2147483648
    %v672 = vor.u32 1.1754944e-38, %v671
    %v673 = vsel %vm670, %v672, %v668
    %v674 = vmul.f32 1.0, %v673
    %v675 = vrcp.pop %v605
    %v676 = vmul.f32 %v605, %v675
    %v677 = vsub.f32 1.0, %v676
    %v678 = vmul.f32 %v675, %v677
    %v679 = vadd.f32 %v675, %v678
    %vm680 = vweird.f32 %v605
    %vm681 = vweird.f32 %v675
    %vm682 = vmor %vm680, %vm681
    %v683 = vsel %vm682, %v675, %v679
    %v684 = vand.u32 2147483647, %v605
    %vm685 = vcmp.eq.f32.partialorder %v684, 8.507059e+37
    %v686 = vand.u32 %v605, 2147483648
    %v687 = vor.u32 1.1754944e-38, %v686
    %v688 = vsel %vm685, %v687, %v683
    %v689 = vmul.f32 1.0, %v688
    %v690 = vrcp.pop %v606
    %v691 = vmul.f32 %v606, %v690
    %v692 = vsub.f32 1.0, %v691
    %v693 = vmul.f32 %v690, %v692
    %v694 = vadd.f32 %v690, %v693
    %vm695 = vweird.f32 %v606
    %vm696 = vweird.f32 %v690
    %vm697 = vmor %vm695, %vm696
    %v698 = vsel %vm697, %v690, %v694
    %v699 = vand.u32 2147483647, %v606
    %vm700 = vcmp.eq.f32.partialorder %v699, 8.507059e+37
    %v701 = vand.u32 %v606, 2147483648
    %v702 = vor.u32 1.1754944e-38, %v701
    %v703 = vsel %vm700, %v702, %v698
    %v704 = vmul.f32 1.0, %v703
    %v705 = vrcp.pop %v607
    %v706 = vmul.f32 %v607, %v705
    %v707 = vsub.f32 1.0, %v706
    %v708 = vmul.f32 %v705, %v707
    %v709 = vadd.f32 %v705, %v708
    %vm710 = vweird.f32 %v607
    %vm711 = vweird.f32 %v705
    %vm712 = vmor %vm710, %vm711
    %v713 = vsel %vm712, %v705, %v709
    %v714 = vand.u32 2147483647, %v607
    %vm715 = vcmp.eq.f32.partialorder %v714, 8.507059e+37
    %v716 = vand.u32 %v607, 2147483648
    %v717 = vor.u32 1.1754944e-38, %v716
    %v718 = vsel %vm715, %v717, %v713
    %v719 = vmul.f32 1.0, %v718
    %v720 = vrcp.pop %v608
    %v721 = vmul.f32 %v608, %v720
    %v722 = vsub.f32 1.0, %v721
    %v723 = vmul.f32 %v720, %v722
    %v724 = vadd.f32 %v720, %v723
    %vm725 = vweird.f32 %v608
    %vm726 = vweird.f32 %v720
    %vm727 = vmor %vm725, %vm726
    %v728 = vsel %vm727, %v720, %v724
    %v729 = vand.u32 2147483647, %v608
    %vm730 = vcmp.eq.f32.partialorder %v729, 8.507059e+37
    %v731 = vand.u32 %v608, 2147483648
    %v732 = vor.u32 1.1754944e-38, %v731
    %v733 = vsel %vm730, %v732, %v728
    %v734 = vmul.f32 1.0, %v733
    %v735 = vrcp.pop %v609
    %v736 = vmul.f32 %v609, %v735
    %v737 = vsub.f32 1.0, %v736
    %v738 = vmul.f32 %v735, %v737
    %v739 = vadd.f32 %v735, %v738
    %vm740 = vweird.f32 %v609
    %vm741 = vweird.f32 %v735
    %vm742 = vmor %vm740, %vm741
    %v743 = vsel %vm742, %v735, %v739
    %v744 = vand.u32 2147483647, %v609
    %vm745 = vcmp.eq.f32.partialorder %v744, 8.507059e+37
    %v746 = vand.u32 %v609, 2147483648
    %v747 = vor.u32 1.1754944e-38, %v746
    %v748 = vsel %vm745, %v747, %v743
    %v749 = vmul.f32 1.0, %v748
    %v750 = vrcp.pop %v610
    %v751 = vmul.f32 %v610, %v750
    %v752 = vsub.f32 1.0, %v751
    %v753 = vmul.f32 %v750, %v752
    %v754 = vadd.f32 %v750, %v753
    %vm755 = vweird.f32 %v610
    %vm756 = vweird.f32 %v750
    %vm757 = vmor %vm755, %vm756
    %v758 = vsel %vm757, %v750, %v754
    %v759 = vand.u32 2147483647, %v610
    %vm760 = vcmp.eq.f32.partialorder %v759, 8.507059e+37
    %v761 = vand.u32 %v610, 2147483648
    %v762 = vor.u32 1.1754944e-38, %v761
    %v763 = vsel %vm760, %v762, %v758
    %v764 = vmul.f32 1.0, %v763
    %v765 = vrcp.pop %v611
    %v766 = vmul.f32 %v611, %v765
    %v767 = vsub.f32 1.0, %v766
    %v768 = vmul.f32 %v765, %v767
    %v769 = vadd.f32 %v765, %v768
    %vm770 = vweird.f32 %v611
    %vm771 = vweird.f32 %v765
    %vm772 = vmor %vm770, %vm771
    %v773 = vsel %vm772, %v765, %v769
    %v774 = vand.u32 2147483647, %v611
    %vm775 = vcmp.eq.f32.partialorder %v774, 8.507059e+37
    %v776 = vand.u32 %v611, 2147483648
    %v777 = vor.u32 1.1754944e-38, %v776
    %v778 = vsel %vm775, %v777, %v773
    %v779 = vmul.f32 1.0, %v778
    %v780 = vrcp.pop %v612
    %v781 = vmul.f32 %v612, %v780
    %v782 = vsub.f32 1.0, %v781
    %v783 = vmul.f32 %v780, %v782
    %v784 = vadd.f32 %v780, %v783
    %vm785 = vweird.f32 %v612
    %vm786 = vweird.f32 %v780
    %vm787 = vmor %vm785, %vm786
    %v788 = vsel %vm787, %v780, %v784
    %v789 = vand.u32 2147483647, %v612
    %vm790 = vcmp.eq.f32.partialorder %v789, 8.507059e+37
    %v791 = vand.u32 %v612, 2147483648
    %v792 = vor.u32 1.1754944e-38, %v791
    %v793 = vsel %vm790, %v792, %v788
    %v794 = vmul.f32 1.0, %v793
    %v795 = vrcp.pop %v613
    %v796 = vmul.f32 %v613, %v795
    %v797 = vsub.f32 1.0, %v796
    %v798 = vmul.f32 %v795, %v797
    %v799 = vadd.f32 %v795, %v798
    %vm800 = vweird.f32 %v613
    %vm801 = vweird.f32 %v795
    %vm802 = vmor %vm800, %vm801
    %v803 = vsel %vm802, %v795, %v799
    %v804 = vand.u32 2147483647, %v613
    %vm805 = vcmp.eq.f32.partialorder %v804, 8.507059e+37
    %v806 = vand.u32 %v613, 2147483648
    %v807 = vor.u32 1.1754944e-38, %v806
    %v808 = vsel %vm805, %v807, %v803
    %v809 = vmul.f32 1.0, %v808
    %v810 = vrcp.pop %v614
    %v811 = vmul.f32 %v614, %v810
    %v812 = vsub.f32 1.0, %v811
    %v813 = vmul.f32 %v810, %v812
    %v814 = vadd.f32 %v810, %v813
    %vm815 = vweird.f32 %v614
    %vm816 = vweird.f32 %v810
    %vm817 = vmor %vm815, %vm816
    %v818 = vsel %vm817, %v810, %v814
    %v819 = vand.u32 2147483647, %v614
    %vm820 = vcmp.eq.f32.partialorder %v819, 8.507059e+37
    %v821 = vand.u32 %v614, 2147483648
    %v822 = vor.u32 1.1754944e-38, %v821
    %v823 = vsel %vm820, %v822, %v818
    %v824 = vmul.f32 1.0, %v823
    %v825 = vrcp.pop %v615
    %v826 = vmul.f32 %v615, %v825
    %v827 = vsub.f32 1.0, %v826
    %v828 = vmul.f32 %v825, %v827
    %v829 = vadd.f32 %v825, %v828
    %vm830 = vweird.f32 %v615
    %vm831 = vweird.f32 %v825
    %vm832 = vmor %vm830, %vm831
    %v833 = vsel %vm832, %v825, %v829
    %v834 = vand.u32 2147483647, %v615
    %vm835 = vcmp.eq.f32.partialorder %v834, 8.507059e+37
    %v836 = vand.u32 %v615, 2147483648
    %v837 = vor.u32 1.1754944e-38, %v836
    %v838 = vsel %vm835, %v837, %v833
    %v839 = vmul.f32 1.0, %v838
    %v840 = vrcp.pop %v616
    %v841 = vmul.f32 %v616, %v840
    %v842 = vsub.f32 1.0, %v841
    %v843 = vmul.f32 %v840, %v842
    %v844 = vadd.f32 %v840, %v843
    %vm845 = vweird.f32 %v616
    %vm846 = vweird.f32 %v840
    %vm847 = vmor %vm845, %vm846
    %v848 = vsel %vm847, %v840, %v844
    %v849 = vand.u32 2147483647, %v616
    %vm850 = vcmp.eq.f32.partialorder %v849, 8.507059e+37
    %v851 = vand.u32 %v616, 2147483648
    %v852 = vor.u32 1.1754944e-38, %v851
    %v853 = vsel %vm850, %v852, %v848
    %v854 = vmul.f32 1.0, %v853
    %v855 = vrcp.pop %v617
    %v856 = vmul.f32 %v617, %v855
    %v857 = vsub.f32 1.0, %v856
    %v858 = vmul.f32 %v855, %v857
    %v859 = vadd.f32 %v855, %v858
    %vm860 = vweird.f32 %v617
    %vm861 = vweird.f32 %v855
    %vm862 = vmor %vm860, %vm861
    %v863 = vsel %vm862, %v855, %v859
    %v864 = vand.u32 2147483647, %v617
    %vm865 = vcmp.eq.f32.partialorder %v864, 8.507059e+37
    %v866 = vand.u32 %v617, 2147483648
    %v867 = vor.u32 1.1754944e-38, %v866
    %v868 = vsel %vm865, %v867, %v863
    %v869 = vmul.f32 1.0, %v868
    %v870 = vrcp.pop %v618
    %v871 = vmul.f32 %v618, %v870
    %v872 = vsub.f32 1.0, %v871
    %v873 = vmul.f32 %v870, %v872
    %v874 = vadd.f32 %v870, %v873
    %vm875 = vweird.f32 %v618
    %vm876 = vweird.f32 %v870
    %vm877 = vmor %vm875, %vm876
    %v878 = vsel %vm877, %v870, %v874
    %v879 = vand.u32 2147483647, %v618
    %vm880 = vcmp.eq.f32.partialorder %v879, 8.507059e+37
    %v881 = vand.u32 %v618, 2147483648
    %v882 = vor.u32 1.1754944e-38, %v881
    %v883 = vsel %vm880, %v882, %v878
    %v884 = vmul.f32 1.0, %v883
    %v885 = vrcp.pop %v619
    %v886 = vmul.f32 %v619, %v885
    %v887 = vsub.f32 1.0, %v886
    %v888 = vmul.f32 %v885, %v887
    %v889 = vadd.f32 %v885, %v888
    %vm890 = vweird.f32 %v619
    %vm891 = vweird.f32 %v885
    %vm892 = vmor %vm890, %vm891
    %v893 = vsel %vm892, %v885, %v889
    %v894 = vand.u32 2147483647, %v619
    %vm895 = vcmp.eq.f32.partialorder %v894, 8.507059e+37
    %v896 = vand.u32 %v619, 2147483648
    %v897 = vor.u32 1.1754944e-38, %v896
    %v898 = vsel %vm895, %v897, %v893
    %v899 = vmul.f32 1.0, %v898
    %v900 = vrcp.pop %v620
    %v901 = vmul.f32 %v620, %v900
    %v902 = vsub.f32 1.0, %v901
    %v903 = vmul.f32 %v900, %v902
    %v904 = vadd.f32 %v900, %v903
    %vm905 = vweird.f32 %v620
    %vm906 = vweird.f32 %v900
    %vm907 = vmor %vm905, %vm906
    %v908 = vsel %vm907, %v900, %v904
    %v909 = vand.u32 2147483647, %v620
    %vm910 = vcmp.eq.f32.partialorder %v909, 8.507059e+37
    %v911 = vand.u32 %v620, 2147483648
    %v912 = vor.u32 1.1754944e-38, %v911
    %v913 = vsel %vm910, %v912, %v908
    %v914 = vmul.f32 1.0, %v913
    %v915 = vrcp.pop %v621
    %v916 = vmul.f32 %v621, %v915
    %v917 = vsub.f32 1.0, %v916
    %v918 = vmul.f32 %v915, %v917
    %v919 = vadd.f32 %v915, %v918
    %vm920 = vweird.f32 %v621
    %vm921 = vweird.f32 %v915
    %vm922 = vmor %vm920, %vm921
    %v923 = vsel %vm922, %v915, %v919
    %v924 = vand.u32 2147483647, %v621
    %vm925 = vcmp.eq.f32.partialorder %v924, 8.507059e+37
    %v926 = vand.u32 %v621, 2147483648
    %v927 = vor.u32 1.1754944e-38, %v926
    %v928 = vsel %vm925, %v927, %v923
    %v929 = vmul.f32 1.0, %v928
    %v930 = vrcp.pop %v622
    %v931 = vmul.f32 %v622, %v930
    %v932 = vsub.f32 1.0, %v931
    %v933 = vmul.f32 %v930, %v932
    %v934 = vadd.f32 %v930, %v933
    %vm935 = vweird.f32 %v622
    %vm936 = vweird.f32 %v930
    %vm937 = vmor %vm935, %vm936
    %v938 = vsel %vm937, %v930, %v934
    %v939 = vand.u32 2147483647, %v622
    %vm940 = vcmp.eq.f32.partialorder %v939, 8.507059e+37
    %v941 = vand.u32 %v622, 2147483648
    %v942 = vor.u32 1.1754944e-38, %v941
    %v943 = vsel %vm940, %v942, %v938
    %v944 = vmul.f32 1.0, %v943
    %v945 = vrcp.pop %v623
    %v946 = vmul.f32 %v623, %v945
    %v947 = vsub.f32 1.0, %v946
    %v948 = vmul.f32 %v945, %v947
    %v949 = vadd.f32 %v945, %v948
    %vm950 = vweird.f32 %v623
    %vm951 = vweird.f32 %v945
    %vm952 = vmor %vm950, %vm951
    %v953 = vsel %vm952, %v945, %v949
    %v954 = vand.u32 2147483647, %v623
    %vm955 = vcmp.eq.f32.partialorder %v954, 8.507059e+37
    %v956 = vand.u32 %v623, 2147483648
    %v957 = vor.u32 1.1754944e-38, %v956
    %v958 = vsel %vm955, %v957, %v953
    %v959 = vmul.f32 1.0, %v958
    %v960 = vrcp.pop %v624
    %v961 = vmul.f32 %v624, %v960
    %v962 = vsub.f32 1.0, %v961
    %v963 = vmul.f32 %v960, %v962
    %v964 = vadd.f32 %v960, %v963
    %vm965 = vweird.f32 %v624
    %vm966 = vweird.f32 %v960
    %vm967 = vmor %vm965, %vm966
    %v968 = vsel %vm967, %v960, %v964
    %v969 = vand.u32 2147483647, %v624
    %vm970 = vcmp.eq.f32.partialorder %v969, 8.507059e+37
    %v971 = vand.u32 %v624, 2147483648
    %v972 = vor.u32 1.1754944e-38, %v971
    %v973 = vsel %vm970, %v972, %v968
    %v974 = vmul.f32 1.0, %v973
    %v975 = vrcp.pop %v625
    %v976 = vmul.f32 %v625, %v975
    %v977 = vsub.f32 1.0, %v976
    %v978 = vmul.f32 %v975, %v977
    %v979 = vadd.f32 %v975, %v978
    %vm980 = vweird.f32 %v625
    %vm981 = vweird.f32 %v975
    %vm982 = vmor %vm980, %vm981
    %v983 = vsel %vm982, %v975, %v979
    %v984 = vand.u32 2147483647, %v625
    %vm985 = vcmp.eq.f32.partialorder %v984, 8.507059e+37
    %v986 = vand.u32 %v625, 2147483648
    %v987 = vor.u32 1.1754944e-38, %v986
    %v988 = vsel %vm985, %v987, %v983
    %v989 = vmul.f32 1.0, %v988
    %v990 = vrcp.pop %v626
    %v991 = vmul.f32 %v626, %v990
    %v992 = vsub.f32 1.0, %v991
    %v993 = vmul.f32 %v990, %v992
    %v994 = vadd.f32 %v990, %v993
    %vm995 = vweird.f32 %v626
    %vm996 = vweird.f32 %v990
    %vm997 = vmor %vm995, %vm996
    %v998 = vsel %vm997, %v990, %v994
    %v999 = vand.u32 2147483647, %v626
    %vm1000 = vcmp.eq.f32.partialorder %v999, 8.507059e+37
    %v1001 = vand.u32 %v626, 2147483648
    %v1002 = vor.u32 1.1754944e-38, %v1001
    %v1003 = vsel %vm1000, %v1002, %v998
    %v1004 = vmul.f32 1.0, %v1003
    %v1005 = vrcp.pop %v627
    %v1006 = vmul.f32 %v627, %v1005
    %v1007 = vsub.f32 1.0, %v1006
    %v1008 = vmul.f32 %v1005, %v1007
    %v1009 = vadd.f32 %v1005, %v1008
    %vm1010 = vweird.f32 %v627
    %vm1011 = vweird.f32 %v1005
    %vm1012 = vmor %vm1010, %vm1011
    %v1013 = vsel %vm1012, %v1005, %v1009
    %v1014 = vand.u32 2147483647, %v627
    %vm1015 = vcmp.eq.f32.partialorder %v1014, 8.507059e+37
    %v1016 = vand.u32 %v627, 2147483648
    %v1017 = vor.u32 1.1754944e-38, %v1016
    %v1018 = vsel %vm1015, %v1017, %v1013
    %v1019 = vmul.f32 1.0, %v1018
    %v1020 = vrcp.pop %v628
    %v1021 = vmul.f32 %v628, %v1020
    %v1022 = vsub.f32 1.0, %v1021
    %v1023 = vmul.f32 %v1020, %v1022
    %v1024 = vadd.f32 %v1020, %v1023
    %vm1025 = vweird.f32 %v628
    %vm1026 = vweird.f32 %v1020
    %vm1027 = vmor %vm1025, %vm1026
    %v1028 = vsel %vm1027, %v1020, %v1024
    %v1029 = vand.u32 2147483647, %v628
    %vm1030 = vcmp.eq.f32.partialorder %v1029, 8.507059e+37
    %v1031 = vand.u32 %v628, 2147483648
    %v1032 = vor.u32 1.1754944e-38, %v1031
    %v1033 = vsel %vm1030, %v1032, %v1028
    %v1034 = vmul.f32 1.0, %v1033
    %v1035 = vrcp.pop %v629
    %v1036 = vmul.f32 %v629, %v1035
    %v1037 = vsub.f32 1.0, %v1036
    %v1038 = vmul.f32 %v1035, %v1037
    %v1039 = vadd.f32 %v1035, %v1038
    %vm1040 = vweird.f32 %v629
    %vm1041 = vweird.f32 %v1035
    %vm1042 = vmor %vm1040, %vm1041
    %v1043 = vsel %vm1042, %v1035, %v1039
    %v1044 = vand.u32 2147483647, %v629
    %vm1045 = vcmp.eq.f32.partialorder %v1044, 8.507059e+37
    %v1046 = vand.u32 %v629, 2147483648
    %v1047 = vor.u32 1.1754944e-38, %v1046
    %v1048 = vsel %vm1045, %v1047, %v1043
    %v1049 = vmul.f32 1.0, %v1048
    %v1050 = vrcp.pop %v630
    %v1051 = vmul.f32 %v630, %v1050
    %v1052 = vsub.f32 1.0, %v1051
    %v1053 = vmul.f32 %v1050, %v1052
    %v1054 = vadd.f32 %v1050, %v1053
    %vm1055 = vweird.f32 %v630
    %vm1056 = vweird.f32 %v1050
    %vm1057 = vmor %vm1055, %vm1056
    %v1058 = vsel %vm1057, %v1050, %v1054
    %v1059 = vand.u32 2147483647, %v630
    %vm1060 = vcmp.eq.f32.partialorder %v1059, 8.507059e+37
    %v1061 = vand.u32 %v630, 2147483648
    %v1062 = vor.u32 1.1754944e-38, %v1061
    %v1063 = vsel %vm1060, %v1062, %v1058
    %v1064 = vmul.f32 1.0, %v1063
    %v1065 = vrcp.pop %v631
    %v1066 = vmul.f32 %v631, %v1065
    %v1067 = vsub.f32 1.0, %v1066
    %v1068 = vmul.f32 %v1065, %v1067
    %v1069 = vadd.f32 %v1065, %v1068
    %vm1070 = vweird.f32 %v631
    %vm1071 = vweird.f32 %v1065
    %vm1072 = vmor %vm1070, %vm1071
    %v1073 = vsel %vm1072, %v1065, %v1069
    %v1074 = vand.u32 2147483647, %v631
    %vm1075 = vcmp.eq.f32.partialorder %v1074, 8.507059e+37
    %v1076 = vand.u32 %v631, 2147483648
    %v1077 = vor.u32 1.1754944e-38, %v1076
    %v1078 = vsel %vm1075, %v1077, %v1073
    %v1079 = vmul.f32 1.0, %v1078
    %v1080 = vrcp.pop %v632
    %v1081 = vmul.f32 %v632, %v1080
    %v1082 = vsub.f32 1.0, %v1081
    %v1083 = vmul.f32 %v1080, %v1082
    %v1084 = vadd.f32 %v1080, %v1083
    %vm1085 = vweird.f32 %v632
    %vm1086 = vweird.f32 %v1080
    %vm1087 = vmor %vm1085, %vm1086
    %v1088 = vsel %vm1087, %v1080, %v1084
    %v1089 = vand.u32 2147483647, %v632
    %vm1090 = vcmp.eq.f32.partialorder %v1089, 8.507059e+37
    %v1091 = vand.u32 %v632, 2147483648
    %v1092 = vor.u32 1.1754944e-38, %v1091
    %v1093 = vsel %vm1090, %v1092, %v1088
    %v1094 = vmul.f32 1.0, %v1093
    %v1095 = vrcp.pop %v633
    %v1096 = vmul.f32 %v633, %v1095
    %v1097 = vsub.f32 1.0, %v1096
    %v1098 = vmul.f32 %v1095, %v1097
    %v1099 = vadd.f32 %v1095, %v1098
    %vm1100 = vweird.f32 %v633
    %vm1101 = vweird.f32 %v1095
    %vm1102 = vmor %vm1100, %vm1101
    %v1103 = vsel %vm1102, %v1095, %v1099
    %v1104 = vand.u32 2147483647, %v633
    %vm1105 = vcmp.eq.f32.partialorder %v1104, 8.507059e+37
    %v1106 = vand.u32 %v633, 2147483648
    %v1107 = vor.u32 1.1754944e-38, %v1106
    %v1108 = vsel %vm1105, %v1107, %v1103
    %v1109 = vmul.f32 1.0, %v1108
    %v1110 = vrcp.pop %v634
    %v1111 = vmul.f32 %v634, %v1110
    %v1112 = vsub.f32 1.0, %v1111
    %v1113 = vmul.f32 %v1110, %v1112
    %v1114 = vadd.f32 %v1110, %v1113
    %vm1115 = vweird.f32 %v634
    %vm1116 = vweird.f32 %v1110
    %vm1117 = vmor %vm1115, %vm1116
    %v1118 = vsel %vm1117, %v1110, %v1114
    %v1119 = vand.u32 2147483647, %v634
    %vm1120 = vcmp.eq.f32.partialorder %v1119, 8.507059e+37
    %v1121 = vand.u32 %v634, 2147483648
    %v1122 = vor.u32 1.1754944e-38, %v1121
    %v1123 = vsel %vm1120, %v1122, %v1118
    %v1124 = vmul.f32 1.0, %v1123
    %v1125 = vrcp.pop %v635
    %v1126 = vmul.f32 %v635, %v1125
    %v1127 = vsub.f32 1.0, %v1126
    %v1128 = vmul.f32 %v1125, %v1127
    %v1129 = vadd.f32 %v1125, %v1128
    %vm1130 = vweird.f32 %v635
    %vm1131 = vweird.f32 %v1125
    %vm1132 = vmor %vm1130, %vm1131
    %v1133 = vsel %vm1132, %v1125, %v1129
    %v1134 = vand.u32 2147483647, %v635
    %vm1135 = vcmp.eq.f32.partialorder %v1134, 8.507059e+37
    %v1136 = vand.u32 %v635, 2147483648
    %v1137 = vor.u32 1.1754944e-38, %v1136
    %v1138 = vsel %vm1135, %v1137, %v1133
    %v1139 = vmul.f32 1.0, %v1138
    %v1140 = vrcp.pop %v636
    %v1141 = vmul.f32 %v636, %v1140
    %v1142 = vsub.f32 1.0, %v1141
    %v1143 = vmul.f32 %v1140, %v1142
    %v1144 = vadd.f32 %v1140, %v1143
    %vm1145 = vweird.f32 %v636
    %vm1146 = vweird.f32 %v1140
    %vm1147 = vmor %vm1145, %vm1146
    %v1148 = vsel %vm1147, %v1140, %v1144
    %v1149 = vand.u32 2147483647, %v636
    %vm1150 = vcmp.eq.f32.partialorder %v1149, 8.507059e+37
    %v1151 = vand.u32 %v636, 2147483648
    %v1152 = vor.u32 1.1754944e-38, %v1151
    %v1153 = vsel %vm1150, %v1152, %v1148
    %v1154 = vmul.f32 1.0, %v1153
    %v1155 = vrcp.pop %v637
    %v1156 = vmul.f32 %v637, %v1155
    %v1157 = vsub.f32 1.0, %v1156
    %v1158 = vmul.f32 %v1155, %v1157
    %v1159 = vadd.f32 %v1155, %v1158
    %vm1160 = vweird.f32 %v637
    %vm1161 = vweird.f32 %v1155
    %vm1162 = vmor %vm1160, %vm1161
    %v1163 = vsel %vm1162, %v1155, %v1159
    %v1164 = vand.u32 2147483647, %v637
    %vm1165 = vcmp.eq.f32.partialorder %v1164, 8.507059e+37
    %v1166 = vand.u32 %v637, 2147483648
    %v1167 = vor.u32 1.1754944e-38, %v1166
    %v1168 = vsel %vm1165, %v1167, %v1163
    %v1169 = vmul.f32 1.0, %v1168
    %v1170 = vrcp.pop %v638
    %v1171 = vmul.f32 %v638, %v1170
    %v1172 = vsub.f32 1.0, %v1171
    %v1173 = vmul.f32 %v1170, %v1172
    %v1174 = vadd.f32 %v1170, %v1173
    %vm1175 = vweird.f32 %v638
    %vm1176 = vweird.f32 %v1170
    %vm1177 = vmor %vm1175, %vm1176
    %v1178 = vsel %vm1177, %v1170, %v1174
    %v1179 = vand.u32 2147483647, %v638
    %vm1180 = vcmp.eq.f32.partialorder %v1179, 8.507059e+37
    %v1181 = vand.u32 %v638, 2147483648
    %v1182 = vor.u32 1.1754944e-38, %v1181
    %v1183 = vsel %vm1180, %v1182, %v1178
    %v1184 = vmul.f32 1.0, %v1183
    %v1185 = vrcp.pop %v639
    %v1186 = vmul.f32 %v639, %v1185
    %v1187 = vsub.f32 1.0, %v1186
    %v1188 = vmul.f32 %v1185, %v1187
    %v1189 = vadd.f32 %v1185, %v1188
    %vm1190 = vweird.f32 %v639
    %vm1191 = vweird.f32 %v1185
    %vm1192 = vmor %vm1190, %vm1191
    %v1193 = vsel %vm1192, %v1185, %v1189
    %v1194 = vand.u32 2147483647, %v639
    %vm1195 = vcmp.eq.f32.partialorder %v1194, 8.507059e+37
    %v1196 = vand.u32 %v639, 2147483648
    %v1197 = vor.u32 1.1754944e-38, %v1196
    %v1198 = vsel %vm1195, %v1197, %v1193
    %v1199 = vmul.f32 1.0, %v1198
    %v1200 = vrcp.pop %v640
    %v1201 = vmul.f32 %v640, %v1200
    %v1202 = vsub.f32 1.0, %v1201
    %v1203 = vmul.f32 %v1200, %v1202
    %v1204 = vadd.f32 %v1200, %v1203
    %vm1205 = vweird.f32 %v640
    %vm1206 = vweird.f32 %v1200
    %vm1207 = vmor %vm1205, %vm1206
    %v1208 = vsel %vm1207, %v1200, %v1204
    %v1209 = vand.u32 2147483647, %v640
    %vm1210 = vcmp.eq.f32.partialorder %v1209, 8.507059e+37
    %v1211 = vand.u32 %v640, 2147483648
    %v1212 = vor.u32 1.1754944e-38, %v1211
    %v1213 = vsel %vm1210, %v1212, %v1208
    %v1214 = vmul.f32 1.0, %v1213
    %v1215 = vrcp.pop %v641
    %v1216 = vmul.f32 %v641, %v1215
    %v1217 = vsub.f32 1.0, %v1216
    %v1218 = vmul.f32 %v1215, %v1217
    %v1219 = vadd.f32 %v1215, %v1218
    %vm1220 = vweird.f32 %v641
    %vm1221 = vweird.f32 %v1215
    %vm1222 = vmor %vm1220, %vm1221
    %v1223 = vsel %vm1222, %v1215, %v1219
    %v1224 = vand.u32 2147483647, %v641
    %vm1225 = vcmp.eq.f32.partialorder %v1224, 8.507059e+37
    %v1226 = vand.u32 %v641, 2147483648
    %v1227 = vor.u32 1.1754944e-38, %v1226
    %v1228 = vsel %vm1225, %v1227, %v1223
    %v1229 = vmul.f32 1.0, %v1228
    %v1230 = vrcp.pop %v642
    %v1231 = vmul.f32 %v642, %v1230
    %v1232 = vsub.f32 1.0, %v1231
    %v1233 = vmul.f32 %v1230, %v1232
    %v1234 = vadd.f32 %v1230, %v1233
    %vm1235 = vweird.f32 %v642
    %vm1236 = vweird.f32 %v1230
    %vm1237 = vmor %vm1235, %vm1236
    %v1238 = vsel %vm1237, %v1230, %v1234
    %v1239 = vand.u32 2147483647, %v642
    %vm1240 = vcmp.eq.f32.partialorder %v1239, 8.507059e+37
    %v1241 = vand.u32 %v642, 2147483648
    %v1242 = vor.u32 1.1754944e-38, %v1241
    %v1243 = vsel %vm1240, %v1242, %v1238
    %v1244 = vmul.f32 1.0, %v1243
    %v1245 = vrcp.pop %v643
    %v1246 = vmul.f32 %v643, %v1245
    %v1247 = vsub.f32 1.0, %v1246
    %v1248 = vmul.f32 %v1245, %v1247
    %v1249 = vadd.f32 %v1245, %v1248
    %vm1250 = vweird.f32 %v643
    %vm1251 = vweird.f32 %v1245
    %vm1252 = vmor %vm1250, %vm1251
    %v1253 = vsel %vm1252, %v1245, %v1249
    %v1254 = vand.u32 2147483647, %v643
    %vm1255 = vcmp.eq.f32.partialorder %v1254, 8.507059e+37
    %v1256 = vand.u32 %v643, 2147483648
    %v1257 = vor.u32 1.1754944e-38, %v1256
    %v1258 = vsel %vm1255, %v1257, %v1253
    %v1259 = vmul.f32 1.0, %v1258
    %v1260 = vrcp.pop %v644
    %v1261 = vmul.f32 %v644, %v1260
    %v1262 = vsub.f32 1.0, %v1261
    %v1263 = vmul.f32 %v1260, %v1262
    %v1264 = vadd.f32 %v1260, %v1263
    %vm1265 = vweird.f32 %v644
    %vm1266 = vweird.f32 %v1260
    %vm1267 = vmor %vm1265, %vm1266
    %v1268 = vsel %vm1267, %v1260, %v1264
    %v1269 = vand.u32 2147483647, %v644
    %vm1270 = vcmp.eq.f32.partialorder %v1269, 8.507059e+37
    %v1271 = vand.u32 %v644, 2147483648
    %v1272 = vor.u32 1.1754944e-38, %v1271
    %v1273 = vsel %vm1270, %v1272, %v1268
    %v1274 = vmul.f32 1.0, %v1273
    %v1275 = vrcp.pop %v645
    %v1276 = vmul.f32 %v645, %v1275
    %v1277 = vsub.f32 1.0, %v1276
    %v1278 = vmul.f32 %v1275, %v1277
    %v1279 = vadd.f32 %v1275, %v1278
    %vm1280 = vweird.f32 %v645
    %vm1281 = vweird.f32 %v1275
    %vm1282 = vmor %vm1280, %vm1281
    %v1283 = vsel %vm1282, %v1275, %v1279
    %v1284 = vand.u32 2147483647, %v645
    %vm1285 = vcmp.eq.f32.partialorder %v1284, 8.507059e+37
    %v1286 = vand.u32 %v645, 2147483648
    %v1287 = vor.u32 1.1754944e-38, %v1286
    %v1288 = vsel %vm1285, %v1287, %v1283
    %v1289 = vmul.f32 1.0, %v1288
    %v1290 = vrcp.pop %v646
    %v1291 = vmul.f32 %v646, %v1290
    %v1292 = vsub.f32 1.0, %v1291
    %v1293 = vmul.f32 %v1290, %v1292
    %v1294 = vadd.f32 %v1290, %v1293
    %vm1295 = vweird.f32 %v646
    %vm1296 = vweird.f32 %v1290
    %vm1297 = vmor %vm1295, %vm1296
    %v1298 = vsel %vm1297, %v1290, %v1294
    %v1299 = vand.u32 2147483647, %v646
    %vm1300 = vcmp.eq.f32.partialorder %v1299, 8.507059e+37
    %v1301 = vand.u32 %v646, 2147483648
    %v1302 = vor.u32 1.1754944e-38, %v1301
    %v1303 = vsel %vm1300, %v1302, %v1298
    %v1304 = vmul.f32 1.0, %v1303
    %v1305 = vrcp.pop %v647
    %v1306 = vmul.f32 %v647, %v1305
    %v1307 = vsub.f32 1.0, %v1306
    %v1308 = vmul.f32 %v1305, %v1307
    %v1309 = vadd.f32 %v1305, %v1308
    %vm1310 = vweird.f32 %v647
    %vm1311 = vweird.f32 %v1305
    %vm1312 = vmor %vm1310, %vm1311
    %v1313 = vsel %vm1312, %v1305, %v1309
    %v1314 = vand.u32 2147483647, %v647
    %vm1315 = vcmp.eq.f32.partialorder %v1314, 8.507059e+37
    %v1316 = vand.u32 %v647, 2147483648
    %v1317 = vor.u32 1.1754944e-38, %v1316
    %v1318 = vsel %vm1315, %v1317, %v1313
    %v1319 = vmul.f32 1.0, %v1318
    %v1320 = vrcp.pop %v648
    %v1321 = vmul.f32 %v648, %v1320
    %v1322 = vsub.f32 1.0, %v1321
    %v1323 = vmul.f32 %v1320, %v1322
    %v1324 = vadd.f32 %v1320, %v1323
    %vm1325 = vweird.f32 %v648
    %vm1326 = vweird.f32 %v1320
    %vm1327 = vmor %vm1325, %vm1326
    %v1328 = vsel %vm1327, %v1320, %v1324
    %v1329 = vand.u32 2147483647, %v648
    %vm1330 = vcmp.eq.f32.partialorder %v1329, 8.507059e+37
    %v1331 = vand.u32 %v648, 2147483648
    %v1332 = vor.u32 1.1754944e-38, %v1331
    %v1333 = vsel %vm1330, %v1332, %v1328
    %v1334 = vmul.f32 1.0, %v1333
    %v1335 = vrcp.pop %v649
    %v1336 = vmul.f32 %v649, %v1335
    %v1337 = vsub.f32 1.0, %v1336
    %v1338 = vmul.f32 %v1335, %v1337
    %v1339 = vadd.f32 %v1335, %v1338
    %vm1340 = vweird.f32 %v649
    %vm1341 = vweird.f32 %v1335
    %vm1342 = vmor %vm1340, %vm1341
    %v1343 = vsel %vm1342, %v1335, %v1339
    %v1344 = vand.u32 2147483647, %v649
    %vm1345 = vcmp.eq.f32.partialorder %v1344, 8.507059e+37
    %v1346 = vand.u32 %v649, 2147483648
    %v1347 = vor.u32 1.1754944e-38, %v1346
    %v1348 = vsel %vm1345, %v1347, %v1343
    %v1349 = vmul.f32 1.0, %v1348
    %v1350 = vrcp.pop %v650
    %v1351 = vmul.f32 %v650, %v1350
    %v1352 = vsub.f32 1.0, %v1351
    %v1353 = vmul.f32 %v1350, %v1352
    %v1354 = vadd.f32 %v1350, %v1353
    %vm1355 = vweird.f32 %v650
    %vm1356 = vweird.f32 %v1350
    %vm1357 = vmor %vm1355, %vm1356
    %v1358 = vsel %vm1357, %v1350, %v1354
    %v1359 = vand.u32 2147483647, %v650
    %vm1360 = vcmp.eq.f32.partialorder %v1359, 8.507059e+37
    %v1361 = vand.u32 %v650, 2147483648
    %v1362 = vor.u32 1.1754944e-38, %v1361
    %v1363 = vsel %vm1360, %v1362, %v1358
    %v1364 = vmul.f32 1.0, %v1363
    %v1365 = vrcp.pop %v651
    %v1366 = vmul.f32 %v651, %v1365
    %v1367 = vsub.f32 1.0, %v1366
    %v1368 = vmul.f32 %v1365, %v1367
    %v1369 = vadd.f32 %v1365, %v1368
    %vm1370 = vweird.f32 %v651
    %vm1371 = vweird.f32 %v1365
    %vm1372 = vmor %vm1370, %vm1371
    %v1373 = vsel %vm1372, %v1365, %v1369
    %v1374 = vand.u32 2147483647, %v651
    %vm1375 = vcmp.eq.f32.partialorder %v1374, 8.507059e+37
    %v1376 = vand.u32 %v651, 2147483648
    %v1377 = vor.u32 1.1754944e-38, %v1376
    %v1378 = vsel %vm1375, %v1377, %v1373
    %v1379 = vmul.f32 1.0, %v1378
    %v1380 = vrcp.pop %v652
    %v1381 = vmul.f32 %v652, %v1380
    %v1382 = vsub.f32 1.0, %v1381
    %v1383 = vmul.f32 %v1380, %v1382
    %v1384 = vadd.f32 %v1380, %v1383
    %vm1385 = vweird.f32 %v652
    %vm1386 = vweird.f32 %v1380
    %vm1387 = vmor %vm1385, %vm1386
    %v1388 = vsel %vm1387, %v1380, %v1384
    %v1389 = vand.u32 2147483647, %v652
    %vm1390 = vcmp.eq.f32.partialorder %v1389, 8.507059e+37
    %v1391 = vand.u32 %v652, 2147483648
    %v1392 = vor.u32 1.1754944e-38, %v1391
    %v1393 = vsel %vm1390, %v1392, %v1388
    %v1394 = vmul.f32 1.0, %v1393
    %v1395 = vrcp.pop %v653
    %v1396 = vmul.f32 %v653, %v1395
    %v1397 = vsub.f32 1.0, %v1396
    %v1398 = vmul.f32 %v1395, %v1397
    %v1399 = vadd.f32 %v1395, %v1398
    %vm1400 = vweird.f32 %v653
    %vm1401 = vweird.f32 %v1395
    %vm1402 = vmor %vm1400, %vm1401
    %v1403 = vsel %vm1402, %v1395, %v1399
    %v1404 = vand.u32 2147483647, %v653
    %vm1405 = vcmp.eq.f32.partialorder %v1404, 8.507059e+37
    %v1406 = vand.u32 %v653, 2147483648
    %v1407 = vor.u32 1.1754944e-38, %v1406
    %v1408 = vsel %vm1405, %v1407, %v1403
    %v1409 = vmul.f32 1.0, %v1408
    %v1410 = vrcp.pop %v654
    %v1411 = vmul.f32 %v654, %v1410
    %v1412 = vsub.f32 1.0, %v1411
    %v1413 = vmul.f32 %v1410, %v1412
    %v1414 = vadd.f32 %v1410, %v1413
    %vm1415 = vweird.f32 %v654
    %vm1416 = vweird.f32 %v1410
    %vm1417 = vmor %vm1415, %vm1416
    %v1418 = vsel %vm1417, %v1410, %v1414
    %v1419 = vand.u32 2147483647, %v654
    %vm1420 = vcmp.eq.f32.partialorder %v1419, 8.507059e+37
    %v1421 = vand.u32 %v654, 2147483648
    %v1422 = vor.u32 1.1754944e-38, %v1421
    %v1423 = vsel %vm1420, %v1422, %v1418
    %v1424 = vmul.f32 1.0, %v1423
    %v1425 = vrcp.pop %v655
    %v1426 = vmul.f32 %v655, %v1425
    %v1427 = vsub.f32 1.0, %v1426
    %v1428 = vmul.f32 %v1425, %v1427
    %v1429 = vadd.f32 %v1425, %v1428
    %vm1430 = vweird.f32 %v655
    %vm1431 = vweird.f32 %v1425
    %vm1432 = vmor %vm1430, %vm1431
    %v1433 = vsel %vm1432, %v1425, %v1429
    %v1434 = vand.u32 2147483647, %v655
    %vm1435 = vcmp.eq.f32.partialorder %v1434, 8.507059e+37
    %v1436 = vand.u32 %v655, 2147483648
    %v1437 = vor.u32 1.1754944e-38, %v1436
    %v1438 = vsel %vm1435, %v1437, %v1433
    %v1439 = vmul.f32 1.0, %v1438
    %v1440 = vrcp.pop %v656
    %v1441 = vmul.f32 %v656, %v1440
    %v1442 = vsub.f32 1.0, %v1441
    %v1443 = vmul.f32 %v1440, %v1442
    %v1444 = vadd.f32 %v1440, %v1443
    %vm1445 = vweird.f32 %v656
    %vm1446 = vweird.f32 %v1440
    %vm1447 = vmor %vm1445, %vm1446
    %v1448 = vsel %vm1447, %v1440, %v1444
    %v1449 = vand.u32 2147483647, %v656
    %vm1450 = vcmp.eq.f32.partialorder %v1449, 8.507059e+37
    %v1451 = vand.u32 %v656, 2147483648
    %v1452 = vor.u32 1.1754944e-38, %v1451
    %v1453 = vsel %vm1450, %v1452, %v1448
    %v1454 = vmul.f32 1.0, %v1453
    %v1455 = vrcp.pop %v657
    %v1456 = vmul.f32 %v657, %v1455
    %v1457 = vsub.f32 1.0, %v1456
    %v1458 = vmul.f32 %v1455, %v1457
    %v1459 = vadd.f32 %v1455, %v1458
    %vm1460 = vweird.f32 %v657
    %vm1461 = vweird.f32 %v1455
    %vm1462 = vmor %vm1460, %vm1461
    %v1463 = vsel %vm1462, %v1455, %v1459
    %v1464 = vand.u32 2147483647, %v657
    %vm1465 = vcmp.eq.f32.partialorder %v1464, 8.507059e+37
    %v1466 = vand.u32 %v657, 2147483648
    %v1467 = vor.u32 1.1754944e-38, %v1466
    %v1468 = vsel %vm1465, %v1467, %v1463
    %v1469 = vmul.f32 1.0, %v1468
    %v1470 = vrcp.pop %v658
    %v1471 = vmul.f32 %v658, %v1470
    %v1472 = vsub.f32 1.0, %v1471
    %v1473 = vmul.f32 %v1470, %v1472
    %v1474 = vadd.f32 %v1470, %v1473
    %vm1475 = vweird.f32 %v658
    %vm1476 = vweird.f32 %v1470
    %vm1477 = vmor %vm1475, %vm1476
    %v1478 = vsel %vm1477, %v1470, %v1474
    %v1479 = vand.u32 2147483647, %v658
    %vm1480 = vcmp.eq.f32.partialorder %v1479, 8.507059e+37
    %v1481 = vand.u32 %v658, 2147483648
    %v1482 = vor.u32 1.1754944e-38, %v1481
    %v1483 = vsel %vm1480, %v1482, %v1478
    %v1484 = vmul.f32 1.0, %v1483
    %v1485 = vrcp.pop %v659
    %v1486 = vmul.f32 %v659, %v1485
    %v1487 = vsub.f32 1.0, %v1486
    %v1488 = vmul.f32 %v1485, %v1487
    %v1489 = vadd.f32 %v1485, %v1488
    %vm1490 = vweird.f32 %v659
    %vm1491 = vweird.f32 %v1485
    %vm1492 = vmor %vm1490, %vm1491
    %v1493 = vsel %vm1492, %v1485, %v1489
    %v1494 = vand.u32 2147483647, %v659
    %vm1495 = vcmp.eq.f32.partialorder %v1494, 8.507059e+37
    %v1496 = vand.u32 %v659, 2147483648
    %v1497 = vor.u32 1.1754944e-38, %v1496
    %v1498 = vsel %vm1495, %v1497, %v1493
    %v1499 = vmul.f32 1.0, %v1498
    %1500 = vst [vmem:[#allocation5] sm:$0xff] %v674
    %1501 = vst [vmem:[#allocation5 + $0x8] sm:$0xff] %v689
    %1502 = vst [vmem:[#allocation5 + $0x10] sm:$0xff] %v704
    %1503 = vst [vmem:[#allocation5 + $0x18] sm:$0xff] %v719
    %1504 = vst [vmem:[#allocation5 + $0x20] sm:$0xff] %v734
    %1505 = vst [vmem:[#allocation5 + $0x28] sm:$0xff] %v749
    %1506 = vst [vmem:[#allocation5 + $0x30] sm:$0xff] %v764
    %1507 = vst [vmem:[#allocation5 + $0x38] sm:$0xff] %v779
    %1508 = vst [vmem:[#allocation5 + $0x40] sm:$0xff] %v794
    %1509 = vst [vmem:[#allocation5 + $0x48] sm:$0xff] %v809
    %1510 = vst [vmem:[#allocation5 + $0x50] sm:$0xff] %v824
    %1511 = vst [vmem:[#allocation5 + $0x58] sm:$0xff] %v839
    %1512 = vst [vmem:[#allocation5 + $0x60] sm:$0xff] %v854
    %1513 = vst [vmem:[#allocation5 + $0x68] sm:$0xff] %v869
    %1514 = vst [vmem:[#allocation5 + $0x70] sm:$0xff] %v884
    %1515 = vst [vmem:[#allocation5 + $0x78] sm:$0xff] %v899
    %1516 = vst [vmem:[#allocation5 + $0x80] sm:$0xff] %v914
    %1517 = vst [vmem:[#allocation5 + $0x88] sm:$0xff] %v929
    %1518 = vst [vmem:[#allocation5 + $0x90] sm:$0xff] %v944
    %1519 = vst [vmem:[#allocation5 + $0x98] sm:$0xff] %v959
    %1520 = vst [vmem:[#allocation5 + $0xa0] sm:$0xff] %v974
    %1521 = vst [vmem:[#allocation5 + $0xa8] sm:$0xff] %v989
    %1522 = vst [vmem:[#allocation5 + $0xb0] sm:$0xff] %v1004
    %1523 = vst [vmem:[#allocation5 + $0xb8] sm:$0xff] %v1019
    %1524 = vst [vmem:[#allocation5 + $0xc0] sm:$0xff] %v1034
    %1525 = vst [vmem:[#allocation5 + $0xc8] sm:$0xff] %v1049
    %1526 = vst [vmem:[#allocation5 + $0xd0] sm:$0xff] %v1064
    %1527 = vst [vmem:[#allocation5 + $0xd8] sm:$0xff] %v1079
    %1528 = vst [vmem:[#allocation5 + $0xe0] sm:$0xff] %v1094
    %1529 = vst [vmem:[#allocation5 + $0xe8] sm:$0xff] %v1109
    %1530 = vst [vmem:[#allocation5 + $0xf0] sm:$0xff] %v1124
    %1531 = vst [vmem:[#allocation5 + $0xf8] sm:$0xff] %v1139
    %1532 = vst [vmem:[#allocation5 + $0x100] sm:$0xff] %v1154
    %1533 = vst [vmem:[#allocation5 + $0x108] sm:$0xff] %v1169
    %1534 = vst [vmem:[#allocation5 + $0x110] sm:$0xff] %v1184
    %1535 = vst [vmem:[#allocation5 + $0x118] sm:$0xff] %v1199
    %1536 = vst [vmem:[#allocation5 + $0x120] sm:$0xff] %v1214
    %1537 = vst [vmem:[#allocation5 + $0x128] sm:$0xff] %v1229
    %1538 = vst [vmem:[#allocation5 + $0x130] sm:$0xff] %v1244
    %1539 = vst [vmem:[#allocation5 + $0x138] sm:$0xff] %v1259
    %1540 = vst [vmem:[#allocation5 + $0x140] sm:$0xff] %v1274
    %1541 = vst [vmem:[#allocation5 + $0x148] sm:$0xff] %v1289
    %1542 = vst [vmem:[#allocation5 + $0x150] sm:$0xff] %v1304
    %1543 = vst [vmem:[#allocation5 + $0x158] sm:$0xff] %v1319
    %1544 = vst [vmem:[#allocation5 + $0x160] sm:$0xff] %v1334
    %1545 = vst [vmem:[#allocation5 + $0x168] sm:$0xff] %v1349
    %1546 = vst [vmem:[#allocation5 + $0x170] sm:$0xff] %v1364
    %1547 = vst [vmem:[#allocation5 + $0x178] sm:$0xff] %v1379
    %1548 = vst [vmem:[#allocation5 + $0x180] sm:$0xff] %v1394
    %1549 = vst [vmem:[#allocation5 + $0x188] sm:$0xff] %v1409
    %1550 = vst [vmem:[#allocation5 + $0x190] sm:$0xff] %v1424
    %1551 = vst [vmem:[#allocation5 + $0x198] sm:$0xff] %v1439
    %1552 = vst [vmem:[#allocation5 + $0x1a0] sm:$0xff] %v1454
    %1553 = vst [vmem:[#allocation5 + $0x1a8] sm:$0xff] %v1469
    %1554 = vst [vmem:[#allocation5 + $0x1b0] sm:$0xff] %v1484
    %1555 = vst [vmem:[#allocation5 + $0x1b8] sm:$0xff] %v1499
    // Predicated region
    $region26: #{one_layer_decoder.1} parent=1 // pred_check
      _
    $region27: #{one_layer_decoder.1} parent=1 // pred_check_branch
      %1557 = sbr.rel (0) target = $region29
    $region28: #{one_layer_decoder.1} parent=1 // pred_region
      %1559 = vsyncadd [#allocation4], 0
      %s1560 = sshll.u32 [#allocation5], 4
      %s1561 = int_to_ptr.vmem [resolvable:$true] %s1560
      %s1562 = sshll.u32 %s5, 4
      %s1563 = int_to_ptr.hbm [resolvable:$true] %s1562
      %1568 = dma.vmem_to_hbm [thread:$0]  %s1561, 7168, %s1563, [#allocation4], 896, 896, 56
    $region29: #{one_layer_decoder.1} parent=1 // pred_fallthru
      _
    // Predicated region
    $region30: #{one_layer_decoder.1} parent=1 // pred_check
      _
    $region31: #{one_layer_decoder.1} parent=1 // pred_check_branch
      %1570 = sbr.rel (0) target = $region33
    $region32: #{one_layer_decoder.1} parent=1 // pred_region
      %1572 = dma.done [#allocation4], 7168
    $region33: #{one_layer_decoder.1} parent=1 // pred_fallthru
      _
    %1573 = vsyncpa [#allocation3], 1
    %1574 = vsyncpa [#allocation4], 1

</llo_original>
